<compile_context>
chip_gen: v7x
topology: tpu7x:2x2x1
jax: 0.10.0
libtpu: 0.0.40
codegen_flags: <defaults>
</compile_context>

<pallas_src>
import jax
import jax.numpy as jnp
import numpy as np
from jax.experimental import pallas as pl
from jax.experimental.pallas import tpu as pltpu

D_HID1, D_HID2, D_HID3 = 512, 256, 64
D_HID3_PAD = 128          # 64-wide hidden layer padded to a full 128-lane vreg
LANE = 128


# ---------------------------------------------------------------------------
# Fused MLP kernel: one batch-tile per grid step, all layers chained in-kernel.
# Weights are bf16 [in, out]; biases are f32 [1, out]; accumulation is f32.
# ---------------------------------------------------------------------------
def _mlp_kernel(x_ref, w1_ref, b1_ref, w2_ref, b2_ref, w3_ref, b3_ref,
                w4_ref, b4_ref, o_ref):
    x = x_ref[...].astype(jnp.bfloat16)
    h = jnp.dot(x, w1_ref[...], preferred_element_type=jnp.float32) + b1_ref[...]
    h = jnp.maximum(h, 0.0).astype(jnp.bfloat16)
    h = jnp.dot(h, w2_ref[...], preferred_element_type=jnp.float32) + b2_ref[...]
    h = jnp.maximum(h, 0.0).astype(jnp.bfloat16)
    h = jnp.dot(h, w3_ref[...], preferred_element_type=jnp.float32) + b3_ref[...]
    h = jnp.maximum(h, 0.0).astype(jnp.bfloat16)
    logits = jnp.dot(h, w4_ref[...],
                     preferred_element_type=jnp.float32) + b4_ref[...]
    # Max-stabilised softmax over the (lane-dense, padded) feature axis.
    # Padded lanes carry bias -1e30 -> exp underflows to exactly 0.
    m = jnp.max(logits, axis=-1, keepdims=True)
    e = jnp.exp(logits - m)
    s = jnp.sum(e, axis=-1, keepdims=True)
    o_ref[...] = e * pl.reciprocal(s, approx=True)


# ---------------------------------------------------------------------------
# Wrapper
# ---------------------------------------------------------------------------
def mlp_forward(packed, x, *, tm=512):
    """x: [B, C, H, W] (or any [B, ...]); matches torch view(-1, C*H*W)."""
    B = x.shape[0]
    xf = x.reshape(B, x.shape[1] * x.shape[-2] * x.shape[-1])
    M, K = xf.shape
    n_pad = packed["n_pad"]
    dim_out = packed["dim_out"]

    # Batch-tile selection:
    #  * small batch -> single block (block_shape == full array, no padding),
    #  * large batch that would fit one tile -> split into >=2 grid steps so
    #    v7x's 2 TensorCores both get work,
    #  * otherwise tile at `tm` (multiple of 8) and let Pallas handle the
    #    ragged last block (no wrapper-side jnp.pad / extra HBM copy).
    if M <= tm:
        if M > 512:
            half = (M + 1) // 2
            tm = ((half + 7) // 8) * 8
        else:
            tm = M
    else:
        tm = max(8, (tm // 8) * 8)
    grid = (pl.cdiv(M, tm),)

    def w_spec(shape):
        # Constant index_map: weights/biases stay VMEM-resident across the grid.
        return pl.BlockSpec(shape, lambda i: (0, 0))

    out = pl.pallas_call(
        _mlp_kernel,
        out_shape=jax.ShapeDtypeStruct((M, n_pad), jnp.float32),
        grid_spec=pltpu.PrefetchScalarGridSpec(
            num_scalar_prefetch=0,
            grid=grid,
            in_specs=[
                pl.BlockSpec((tm, K), lambda i: (i, 0)),     # activation tile
                w_spec((K, D_HID1)), w_spec((1, D_HID1)),
                w_spec((D_HID1, D_HID2)), w_spec((1, D_HID2)),
                w_spec((D_HID2, D_HID3_PAD)), w_spec((1, D_HID3_PAD)),
                w_spec((D_HID3_PAD, n_pad)), w_spec((1, n_pad)),
            ],
            out_specs=pl.BlockSpec((tm, n_pad), lambda i: (i, 0)),
        ),
        compiler_params=pltpu.CompilerParams(
            dimension_semantics=("parallel",),
            # Above v5e's 16 MiB scoped default; == default on v6e/v7x.
            vmem_limit_bytes=32 * 1024 * 1024,
        ),
    )(xf,
      packed["w1"], packed["b1"],
      packed["w2"], packed["b2"],
      packed["w3"], packed["b3"],
      packed["w4"], packed["b4"])
    return out[:, :dim_out]


# ---------------------------------------------------------------------------
# Parameters.  Logical params are f32, PyTorch nn.Linear-style init, stored
# pre-transposed as [in, out].  pack_params() produces the kernel-ready
# (bf16, lane-padded) operands.
# ---------------------------------------------------------------------------
def init_params(key, dim_in, dim_out):
    def uni(k, shape, fan_in):
        bound = 1.0 / np.sqrt(fan_in)
        return jax.random.uniform(k, shape, jnp.float32, -bound, bound)

    ks = jax.random.split(key, 8)
    return {
        "w1": uni(ks[0], (dim_in, D_HID1), dim_in),
        "b1": uni(ks[1], (D_HID1,), dim_in),
        "w2": uni(ks[2], (D_HID1, D_HID2), D_HID1),
        "b2": uni(ks[3], (D_HID2,), D_HID1),
        "w3": uni(ks[4], (D_HID2, D_HID3), D_HID2),
        "b3": uni(ks[5], (D_HID3,), D_HID2),
        "w4": uni(ks[6], (D_HID3, dim_out), D_HID3),
        "b4": uni(ks[7], (dim_out,), D_HID3),
    }


def pack_params(params):
    """Kernel-ready params: bf16 matmul operands, 64-wide hidden padded to a
    full 128-lane vreg, final layer padded to a lane-dense (.., n_pad) output.
    Padded b4 entries are a large *finite* negative so the stabilised softmax
    yields exact zeros (never inf - inf -> NaN) in the pad lanes."""
    dim_out = params["w4"].shape[1]
    n_pad = max(LANE, ((dim_out + LANE - 1) // LANE) * LANE)

    w3 = jnp.zeros((D_HID2, D_HID3_PAD), jnp.float32)
    w3 = w3.at[:, :D_HID3].set(params["w3"])
    b3 = jnp.zeros((D_HID3_PAD,), jnp.float32).at[:D_HID3].set(params["b3"])
    w4 = jnp.zeros((D_HID3_PAD, n_pad), jnp.float32)
    w4 = w4.at[:D_HID3, :dim_out].set(params["w4"])
    b4 = jnp.full((n_pad,), -1e30, jnp.float32).at[:dim_out].set(params["b4"])

    return {
        "w1": params["w1"].astype(jnp.bfloat16),
        "b1": params["b1"].reshape(1, -1).astype(jnp.float32),
        "w2": params["w2"].astype(jnp.bfloat16),
        "b2": params["b2"].reshape(1, -1).astype(jnp.float32),
        "w3": w3.astype(jnp.bfloat16),
        "b3": b3.reshape(1, -1),
        "w4": w4.astype(jnp.bfloat16),
        "b4": b4.reshape(1, -1),
        "dim_out": dim_out,
        "n_pad": n_pad,
    }


def reference_forward(params, x):
    """Pure-JAX (f32) mirror of the PyTorch MLP.forward for verification."""
    B = x.shape[0]
    h = x.reshape(B, x.shape[1] * x.shape[-2] * x.shape[-1])
    h = jax.nn.relu(h @ params["w1"] + params["b1"])
    h = jax.nn.relu(h @ params["w2"] + params["b2"])
    h = jax.nn.relu(h @ params["w3"] + params["b3"])
    logits = h @ params["w4"] + params["b4"]
    return jax.nn.softmax(logits, axis=1)


if __name__ == "__main__":
    key = jax.random.PRNGKey(0)
    k_x, k_x2, k_p = jax.random.split(key, 3)

    # Input consistent with the module's view(-1, C*H*W): [B, C, H, W].
    B, C, H, W = 2, 4, 16, 16
    dim_in, dim_out = C * H * W, 10

    params = init_params(k_p, dim_in, dim_out)
    packed = pack_params(params)

    # Small-batch path (single grid step, block == full array).
    x = jax.random.normal(k_x, (B, C, H, W), jnp.float32)
    out = jax.block_until_ready(mlp_forward(packed, x))
    ref = jax.block_until_ready(reference_forward(params, x))
    assert out.shape == (B, dim_out)
    np.testing.assert_allclose(np.asarray(out), np.asarray(ref),
                               rtol=2e-2, atol=5e-3)

    # Multi-step grid with a ragged (non-divisible) last block, no jnp.pad.
    x_big = jax.random.normal(k_x2, (260, C, H, W), jnp.float32)
    out_big = jax.block_until_ready(mlp_forward(packed, x_big, tm=128))
    ref_big = jax.block_until_ready(reference_forward(params, x_big))
    assert out_big.shape == (260, dim_out)
    np.testing.assert_allclose(np.asarray(out_big), np.asarray(ref_big),
                               rtol=2e-2, atol=5e-3)

    print("KERNEL_OK")
</pallas_src>

<mosaic_0001>
module attributes {stable_mosaic.version = 11 : i64} {
  func.func @_mlp_kernel(%arg0: i32, %arg1: memref<2x1024xf32, #tpu.memory_space<vmem>>, %arg2: memref<1024x512xbf16, #tpu.memory_space<vmem>>, %arg3: memref<1x512xf32, #tpu.memory_space<vmem>>, %arg4: memref<512x256xbf16, #tpu.memory_space<vmem>>, %arg5: memref<1x256xf32, #tpu.memory_space<vmem>>, %arg6: memref<256x128xbf16, #tpu.memory_space<vmem>>, %arg7: memref<1x128xf32, #tpu.memory_space<vmem>>, %arg8: memref<128x128xbf16, #tpu.memory_space<vmem>>, %arg9: memref<1x128xf32, #tpu.memory_space<vmem>>, %arg10: memref<2x128xf32, #tpu.memory_space<vmem>>) attributes {dimension_semantics = [#tpu.dimension_semantics<parallel>], iteration_bounds = array<i64: 1>, scalar_prefetch = 0 : i64, scratch_operands = 0 : i64, tpu.core_type = #tpu.core_type<tc>, window_params = [{transform_indices = @transform_0, window_bounds = array<i64: 2, 1024>}, {pipeline_mode = #tpu.pipeline_mode<synchronous>, transform_indices = @transform_1, window_bounds = array<i64: 1024, 512>}, {pipeline_mode = #tpu.pipeline_mode<synchronous>, transform_indices = @transform_2, window_bounds = array<i64: 1, 512>}, {pipeline_mode = #tpu.pipeline_mode<synchronous>, transform_indices = @transform_3, window_bounds = array<i64: 512, 256>}, {pipeline_mode = #tpu.pipeline_mode<synchronous>, transform_indices = @transform_4, window_bounds = array<i64: 1, 256>}, {pipeline_mode = #tpu.pipeline_mode<synchronous>, transform_indices = @transform_5, window_bounds = array<i64: 256, 128>}, {pipeline_mode = #tpu.pipeline_mode<synchronous>, transform_indices = @transform_6, window_bounds = array<i64: 1, 128>}, {pipeline_mode = #tpu.pipeline_mode<synchronous>, transform_indices = @transform_7, window_bounds = array<i64: 128, 128>}, {pipeline_mode = #tpu.pipeline_mode<synchronous>, transform_indices = @transform_8, window_bounds = array<i64: 1, 128>}, {transform_indices = @transform_9, window_bounds = array<i64: 2, 128>}]} {
    %c0 = arith.constant 0 : index
    %c0_0 = arith.constant 0 : index
    %0 = vector.load %arg1[%c0, %c0_0] : memref<2x1024xf32, #tpu.memory_space<vmem>>, vector<2x1024xf32>
    %1 = arith.truncf %0 : vector<2x1024xf32> to vector<2x1024xbf16>
    %c0_1 = arith.constant 0 : index
    %c0_2 = arith.constant 0 : index
    %2 = vector.load %arg2[%c0_1, %c0_2] : memref<1024x512xbf16, #tpu.memory_space<vmem>>, vector<1024x512xbf16>
    %cst = arith.constant dense<0.000000e+00> : vector<2x512xf32>
    %3 = tpu.matmul %1, %2, %cst {dimension_numbers = #tpu.dot_dimension_numbers<[1], [0], [0], [1], [0, 0, 1, 1], [], []>} : vector<2x1024xbf16>, vector<1024x512xbf16>, vector<2x512xf32> -> vector<2x512xf32>
    %c0_3 = arith.constant 0 : index
    %c0_4 = arith.constant 0 : index
    %4 = vector.load %arg3[%c0_3, %c0_4] : memref<1x512xf32, #tpu.memory_space<vmem>>, vector<1x512xf32>
    %5 = vector.broadcast %4 : vector<1x512xf32> to vector<2x512xf32>
    %6 = arith.addf %3, %5 : vector<2x512xf32>
    %cst_5 = arith.constant 0.000000e+00 : f32
    %7 = vector.broadcast %cst_5 : f32 to vector<2x512xf32>
    %8 = arith.maximumf %6, %7 : vector<2x512xf32>
    %9 = arith.truncf %8 : vector<2x512xf32> to vector<2x512xbf16>
    %c0_6 = arith.constant 0 : index
    %c0_7 = arith.constant 0 : index
    %10 = vector.load %arg4[%c0_6, %c0_7] : memref<512x256xbf16, #tpu.memory_space<vmem>>, vector<512x256xbf16>
    %cst_8 = arith.constant dense<0.000000e+00> : vector<2x256xf32>
    %11 = tpu.matmul %9, %10, %cst_8 {dimension_numbers = #tpu.dot_dimension_numbers<[1], [0], [0], [1], [0, 0, 1, 1], [], []>} : vector<2x512xbf16>, vector<512x256xbf16>, vector<2x256xf32> -> vector<2x256xf32>
    %c0_9 = arith.constant 0 : index
    %c0_10 = arith.constant 0 : index
    %12 = vector.load %arg5[%c0_9, %c0_10] : memref<1x256xf32, #tpu.memory_space<vmem>>, vector<1x256xf32>
    %13 = vector.broadcast %12 : vector<1x256xf32> to vector<2x256xf32>
    %14 = arith.addf %11, %13 : vector<2x256xf32>
    %cst_11 = arith.constant 0.000000e+00 : f32
    %15 = vector.broadcast %cst_11 : f32 to vector<2x256xf32>
    %16 = arith.maximumf %14, %15 : vector<2x256xf32>
    %17 = arith.truncf %16 : vector<2x256xf32> to vector<2x256xbf16>
    %c0_12 = arith.constant 0 : index
    %c0_13 = arith.constant 0 : index
    %18 = vector.load %arg6[%c0_12, %c0_13] : memref<256x128xbf16, #tpu.memory_space<vmem>>, vector<256x128xbf16>
    %cst_14 = arith.constant dense<0.000000e+00> : vector<2x128xf32>
    %19 = tpu.matmul %17, %18, %cst_14 {dimension_numbers = #tpu.dot_dimension_numbers<[1], [0], [0], [1], [0, 0, 1, 1], [], []>} : vector<2x256xbf16>, vector<256x128xbf16>, vector<2x128xf32> -> vector<2x128xf32>
    %c0_15 = arith.constant 0 : index
    %c0_16 = arith.constant 0 : index
    %20 = vector.load %arg7[%c0_15, %c0_16] : memref<1x128xf32, #tpu.memory_space<vmem>>, vector<1x128xf32>
    %21 = vector.broadcast %20 : vector<1x128xf32> to vector<2x128xf32>
    %22 = arith.addf %19, %21 : vector<2x128xf32>
    %cst_17 = arith.constant 0.000000e+00 : f32
    %23 = vector.broadcast %cst_17 : f32 to vector<2x128xf32>
    %24 = arith.maximumf %22, %23 : vector<2x128xf32>
    %25 = arith.truncf %24 : vector<2x128xf32> to vector<2x128xbf16>
    %c0_18 = arith.constant 0 : index
    %c0_19 = arith.constant 0 : index
    %26 = vector.load %arg8[%c0_18, %c0_19] : memref<128x128xbf16, #tpu.memory_space<vmem>>, vector<128x128xbf16>
    %cst_20 = arith.constant dense<0.000000e+00> : vector<2x128xf32>
    %27 = tpu.matmul %25, %26, %cst_20 {dimension_numbers = #tpu.dot_dimension_numbers<[1], [0], [0], [1], [0, 0, 1, 1], [], []>} : vector<2x128xbf16>, vector<128x128xbf16>, vector<2x128xf32> -> vector<2x128xf32>
    %c0_21 = arith.constant 0 : index
    %c0_22 = arith.constant 0 : index
    %28 = vector.load %arg9[%c0_21, %c0_22] : memref<1x128xf32, #tpu.memory_space<vmem>>, vector<1x128xf32>
    %29 = vector.broadcast %28 : vector<1x128xf32> to vector<2x128xf32>
    %30 = arith.addf %27, %29 : vector<2x128xf32>
    %cst_23 = arith.constant dense<0xFF800000> : vector<2xf32>
    %31 = vector.multi_reduction <maximumf>, %30, %cst_23 [1] : vector<2x128xf32> to vector<2xf32>
    %32 = vector.shape_cast %31 : vector<2xf32> to vector<2x1xf32>
    %33 = vector.broadcast %32 : vector<2x1xf32> to vector<2x128xf32>
    %34 = arith.subf %30, %33 : vector<2x128xf32>
    %35 = math.exp %34 : vector<2x128xf32>
    %cst_24 = arith.constant dense<0.000000e+00> : vector<2xf32>
    %36 = vector.multi_reduction <add>, %35, %cst_24 [1] : vector<2x128xf32> to vector<2xf32>
    %37 = vector.shape_cast %36 : vector<2xf32> to vector<2x1xf32>
    %38 = tpu.reciprocal %37 {approx = true} : vector<2x1xf32> -> vector<2x1xf32>
    %39 = vector.broadcast %38 : vector<2x1xf32> to vector<2x128xf32>
    %40 = arith.mulf %35, %39 : vector<2x128xf32>
    %c0_25 = arith.constant 0 : index
    %c0_26 = arith.constant 0 : index
    %41 = vector.load %arg10[%c0_25, %c0_26] : memref<2x128xf32, #tpu.memory_space<vmem>>, vector<2x128xf32>
    tpu.vector_store %arg10[%c0_25, %c0_26], %40 {strides = array<i32>} : memref<2x128xf32, #tpu.memory_space<vmem>>, vector<2x128xf32>,
    return
  }
  func.func @transform_0(%arg0: i32) -> (i32, i32) {
    %c0_i32 = arith.constant 0 : i32
    %c0_i32_0 = arith.constant 0 : i32
    return %arg0, %c0_i32 : i32, i32
  }
  func.func @transform_1(%arg0: i32) -> (i32, i32) {
    %c0_i32 = arith.constant 0 : i32
    %c0_i32_0 = arith.constant 0 : i32
    %c0_i32_1 = arith.constant 0 : i32
    return %c0_i32, %c0_i32_0 : i32, i32
  }
  func.func @transform_2(%arg0: i32) -> (i32, i32) {
    %c0_i32 = arith.constant 0 : i32
    %c0_i32_0 = arith.constant 0 : i32
    %c0_i32_1 = arith.constant 0 : i32
    return %c0_i32, %c0_i32_0 : i32, i32
  }
  func.func @transform_3(%arg0: i32) -> (i32, i32) {
    %c0_i32 = arith.constant 0 : i32
    %c0_i32_0 = arith.constant 0 : i32
    %c0_i32_1 = arith.constant 0 : i32
    return %c0_i32, %c0_i32_0 : i32, i32
  }
  func.func @transform_4(%arg0: i32) -> (i32, i32) {
    %c0_i32 = arith.constant 0 : i32
    %c0_i32_0 = arith.constant 0 : i32
    %c0_i32_1 = arith.constant 0 : i32
    return %c0_i32, %c0_i32_0 : i32, i32
  }
  func.func @transform_5(%arg0: i32) -> (i32, i32) {
    %c0_i32 = arith.constant 0 : i32
    %c0_i32_0 = arith.constant 0 : i32
    %c0_i32_1 = arith.constant 0 : i32
    return %c0_i32, %c0_i32_0 : i32, i32
  }
  func.func @transform_6(%arg0: i32) -> (i32, i32) {
    %c0_i32 = arith.constant 0 : i32
    %c0_i32_0 = arith.constant 0 : i32
    %c0_i32_1 = arith.constant 0 : i32
    return %c0_i32, %c0_i32_0 : i32, i32
  }
  func.func @transform_7(%arg0: i32) -> (i32, i32) {
    %c0_i32 = arith.constant 0 : i32
    %c0_i32_0 = arith.constant 0 : i32
    %c0_i32_1 = arith.constant 0 : i32
    return %c0_i32, %c0_i32_0 : i32, i32
  }
  func.func @transform_8(%arg0: i32) -> (i32, i32) {
    %c0_i32 = arith.constant 0 : i32
    %c0_i32_0 = arith.constant 0 : i32
    %c0_i32_1 = arith.constant 0 : i32
    return %c0_i32, %c0_i32_0 : i32, i32
  }
  func.func @transform_9(%arg0: i32) -> (i32, i32) {
    %c0_i32 = arith.constant 0 : i32
    %c0_i32_0 = arith.constant 0 : i32
    return %arg0, %c0_i32 : i32, i32
  }
}

</mosaic_0001>

<llo_original>
// kernel: tpu_custom_call.1
$region0: #{tpu_custom_call.1}
  #allocation0 [shape = 'u32[]', space=smem, size = 0x4, offset = 0x4, fixed_abs, tag = 'smem constant byte address 0x4 - core index']
  #allocation1 [shape = 'u32[144,128]{1,0:T(1,128)}', space=vmem, size = 0x12000, scoped, tag = 'internal scratch']
  %s0 = inlined_call_operand.hbm [shape: f32[2,1024], index: 0, kind: input, shape index: {}]
  %s1 = inlined_call_operand.hbm [shape: bf16[1024,512], index: 1, kind: input, shape index: {}]
  %s2 = inlined_call_operand.vmem [shape: f32[1,512], index: 2, kind: input, shape index: {}]
  %s3 = inlined_call_operand.hbm [shape: bf16[512,256], index: 3, kind: input, shape index: {}]
  %s4 = inlined_call_operand.vmem [shape: f32[1,256], index: 4, kind: input, shape index: {}]
  %s5 = inlined_call_operand.hbm [shape: bf16[256,128], index: 5, kind: input, shape index: {}]
  %s6 = inlined_call_operand.vmem [shape: f32[1,128], index: 6, kind: input, shape index: {}]
  %s7 = inlined_call_operand.hbm [shape: bf16[128,128], index: 7, kind: input, shape index: {}]
  %s8 = inlined_call_operand.vmem [shape: f32[1,128], index: 8, kind: input, shape index: {}]
  %s9 = inlined_call_operand.hbm [shape: f32[2,128], index: 9, kind: output, shape index: {}]
  %s10 = sld [smem:[#allocation0]]
  $region66: #{tpu_custom_call.1} parent=0
    _
  %s12 = ssub.s32 1, %s10
  %s13 = scalar_select 0, %s12, %s10
  $region1: #{tpu_custom_call.1} parent=0
    #allocation2 [shape = 'u8[8192]{0}', space=vmem, size = 0x2000, scoped, tag = 'input window, operand 0, single buffered']
    #allocation3 [shape = 's32[1]{0}', space=sflag, size = 0x4, scoped, tag = 'scoped memory for tpu_custom_call.1']
    #allocation4 [shape = 's32[1]{0}', space=sflag, size = 0x4, scoped, tag = 'scoped memory for tpu_custom_call.1']
    #allocation5 [shape = 'u8[1048576]{0}', space=vmem, size = 0x100000, scoped, tag = 'input window, operand 1, single buffered']
    #allocation6 [shape = 's32[1]{0}', space=sflag, size = 0x4, scoped, tag = 'scoped memory for tpu_custom_call.1']
    #allocation7 [shape = 'u8[262144]{0}', space=vmem, size = 0x40000, scoped, tag = 'input window, operand 3, single buffered']
    #allocation8 [shape = 'u8[65536]{0}', space=vmem, size = 0x10000, scoped, tag = 'input window, operand 5, single buffered']
    #allocation9 [shape = 's32[1]{0}', space=sflag, size = 0x4, scoped, tag = 'scoped memory for tpu_custom_call.1']
    #allocation10 [shape = 'u8[32768]{0}', space=vmem, size = 0x8000, scoped, tag = 'input window, operand 7, single buffered']
    #allocation11 [shape = 'u8[1024]{0}', space=vmem, size = 0x400, scoped, tag = 'output window, operand 0, single buffered']
    %14 = vsyncpa [#allocation3], 0
    %15 = vsyncpa [#allocation6], 0
    %16 = vsyncpa [#allocation9], 0
    %17 = vsyncpa [#allocation4], 0
    // Predicated region
    $region2: #{tpu_custom_call.1} parent=1 // pred_check
      _
    $region3: #{tpu_custom_call.1} parent=1 // pred_check_branch
      %19 = sbr.rel (0) target = $region5
    $region4: #{tpu_custom_call.1} parent=1 // pred_region
      %s21 = ssub.s32 256, 256
      %22 = vsyncadd [#allocation3], %s21
      %s24 = sshll.u32 [#allocation2], 4
      %s25 = int_to_ptr.vmem [resolvable:$true] %s24
      %27 = dma.hbm_to_vmem [thread:$0]  %s0, 256, %s25, [#allocation3]
    $region5: #{tpu_custom_call.1} parent=1 // pred_fallthru
      _
    // Predicated region
    $region6: #{tpu_custom_call.1} parent=1 // pred_check
      _
    $region7: #{tpu_custom_call.1} parent=1 // pred_check_branch
      %29 = sbr.rel (0) target = $region9
    $region8: #{tpu_custom_call.1} parent=1 // pred_region
      %s31 = ssub.s32 32768, 32768
      %32 = vsyncadd [#allocation6], %s31
      %s33 = sshll.u32 [#allocation5], 4
      %s34 = int_to_ptr.vmem [resolvable:$true] %s33
      %39 = dma.hbm_to_vmem [thread:$0]  %s1, 32768, %s34, [#allocation6], 256, 256, 16
    $region9: #{tpu_custom_call.1} parent=1 // pred_fallthru
      _
    // Predicated region
    $region10: #{tpu_custom_call.1} parent=1 // pred_check
      _
    $region11: #{tpu_custom_call.1} parent=1 // pred_check_branch
      %41 = sbr.rel (0) target = $region13
    $region12: #{tpu_custom_call.1} parent=1 // pred_region
      _
    $region13: #{tpu_custom_call.1} parent=1 // pred_fallthru
      _
    // Predicated region
    $region14: #{tpu_custom_call.1} parent=1 // pred_check
      _
    $region15: #{tpu_custom_call.1} parent=1 // pred_check_branch
      %43 = sbr.rel (0) target = $region17
    $region16: #{tpu_custom_call.1} parent=1 // pred_region
      %s45 = ssub.s32 8192, 8192
      %46 = vsyncadd [#allocation6], %s45
      %s47 = sshll.u32 [#allocation7], 4
      %s48 = int_to_ptr.vmem [resolvable:$true] %s47
      %53 = dma.hbm_to_vmem [thread:$0]  %s3, 8192, %s48, [#allocation6], 128, 128, 8
    $region17: #{tpu_custom_call.1} parent=1 // pred_fallthru
      _
    // Predicated region
    $region18: #{tpu_custom_call.1} parent=1 // pred_check
      _
    $region19: #{tpu_custom_call.1} parent=1 // pred_check_branch
      %55 = sbr.rel (0) target = $region21
    $region20: #{tpu_custom_call.1} parent=1 // pred_region
      _
    $region21: #{tpu_custom_call.1} parent=1 // pred_fallthru
      _
    // Predicated region
    $region22: #{tpu_custom_call.1} parent=1 // pred_check
      _
    $region23: #{tpu_custom_call.1} parent=1 // pred_check_branch
      %57 = sbr.rel (0) target = $region25
    $region24: #{tpu_custom_call.1} parent=1 // pred_region
      %s59 = ssub.s32 2048, 2048
      %60 = vsyncadd [#allocation9], %s59
      %s61 = sshll.u32 [#allocation8], 4
      %s62 = int_to_ptr.vmem [resolvable:$true] %s61
      %67 = dma.hbm_to_vmem [thread:$0]  %s5, 2048, %s62, [#allocation9], 64, 64, 4
    $region25: #{tpu_custom_call.1} parent=1 // pred_fallthru
      _
    // Predicated region
    $region26: #{tpu_custom_call.1} parent=1 // pred_check
      _
    $region27: #{tpu_custom_call.1} parent=1 // pred_check_branch
      %69 = sbr.rel (0) target = $region29
    $region28: #{tpu_custom_call.1} parent=1 // pred_region
      _
    $region29: #{tpu_custom_call.1} parent=1 // pred_fallthru
      _
    // Predicated region
    $region30: #{tpu_custom_call.1} parent=1 // pred_check
      _
    $region31: #{tpu_custom_call.1} parent=1 // pred_check_branch
      %71 = sbr.rel (0) target = $region33
    $region32: #{tpu_custom_call.1} parent=1 // pred_region
      %s73 = ssub.s32 1024, 1024
      %74 = vsyncadd [#allocation9], %s73
      %s75 = sshll.u32 [#allocation10], 4
      %s76 = int_to_ptr.vmem [resolvable:$true] %s75
      %81 = dma.hbm_to_vmem [thread:$0]  %s7, 1024, %s76, [#allocation9], 64, 64, 4
    $region33: #{tpu_custom_call.1} parent=1 // pred_fallthru
      _
    // Predicated region
    $region34: #{tpu_custom_call.1} parent=1 // pred_check
      _
    $region35: #{tpu_custom_call.1} parent=1 // pred_check_branch
      %83 = sbr.rel (0) target = $region37
    $region36: #{tpu_custom_call.1} parent=1 // pred_region
      _
    $region37: #{tpu_custom_call.1} parent=1 // pred_fallthru
      _
    // Predicated region
    $region38: #{tpu_custom_call.1} parent=1 // pred_check
      _
    $region39: #{tpu_custom_call.1} parent=1 // pred_check_branch
      %85 = sbr.rel (0) target = $region41
    $region40: #{tpu_custom_call.1} parent=1 // pred_region
      %86 = dma.done [#allocation3], 256
    $region41: #{tpu_custom_call.1} parent=1 // pred_fallthru
      _
    // Predicated region
    $region42: #{tpu_custom_call.1} parent=1 // pred_check
      _
    $region43: #{tpu_custom_call.1} parent=1 // pred_check_branch
      %88 = sbr.rel (0) target = $region45
    $region44: #{tpu_custom_call.1} parent=1 // pred_region
      %89 = dma.done [#allocation6], 32768
    $region45: #{tpu_custom_call.1} parent=1 // pred_fallthru
      _
    // Predicated region
    $region46: #{tpu_custom_call.1} parent=1 // pred_check
      _
    $region47: #{tpu_custom_call.1} parent=1 // pred_check_branch
      %91 = sbr.rel (0) target = $region49
    $region48: #{tpu_custom_call.1} parent=1 // pred_region
      %92 = dma.done [#allocation6], 8192
    $region49: #{tpu_custom_call.1} parent=1 // pred_fallthru
      _
    // Predicated region
    $region50: #{tpu_custom_call.1} parent=1 // pred_check
      _
    $region51: #{tpu_custom_call.1} parent=1 // pred_check_branch
      %94 = sbr.rel (0) target = $region53
    $region52: #{tpu_custom_call.1} parent=1 // pred_region
      %95 = dma.done [#allocation9], 2048
    $region53: #{tpu_custom_call.1} parent=1 // pred_fallthru
      _
    // Predicated region
    $region54: #{tpu_custom_call.1} parent=1 // pred_check
      _
    $region55: #{tpu_custom_call.1} parent=1 // pred_check_branch
      %97 = sbr.rel (0) target = $region57
    $region56: #{tpu_custom_call.1} parent=1 // pred_region
      %98 = dma.done [#allocation9], 1024
    $region57: #{tpu_custom_call.1} parent=1 // pred_fallthru
      _
    %v100 = vld [vmem:[#allocation2] sm:$0xff]
    %v101 = vld [vmem:[#allocation2 + $0x8] sm:$0xff]
    %v104 = vcombine.high %v100, %v100
    %v106 = vunpack.c.l.s4 1983009808
    %v107 = vunpack.c.0.s8 %v106
    %v108 = vlaneseq
    %v109 = vshrl.u32 %v108, 7
    %v110 = vsub.s32 %v107, %v109
    %v111 = vrot.slane %v100, %v110
    %v113 = vunpack.c.l.s4 1983009808
    %v114 = vunpack.c.0.s8 %v113
    %v115 = vlaneseq
    %v116 = vshrl.u32 %v115, 7
    %v117 = vsub.s32 %v114, %v116
    %v118 = vrot.slane %v104, %v117
    %v119 = vcombine.high %v111, %v111
    %v120 = vcombine.high %v118, %v118
    %v121 = vcombine.high %v101, %v101
    %v123 = vunpack.c.l.s4 1983009808
    %v124 = vunpack.c.0.s8 %v123
    %v125 = vlaneseq
    %v126 = vshrl.u32 %v125, 7
    %v127 = vsub.s32 %v124, %v126
    %v128 = vrot.slane %v101, %v127
    %v130 = vunpack.c.l.s4 1983009808
    %v131 = vunpack.c.0.s8 %v130
    %v132 = vlaneseq
    %v133 = vshrl.u32 %v132, 7
    %v134 = vsub.s32 %v131, %v133
    %v135 = vrot.slane %v121, %v134
    %v136 = vcombine.high %v128, %v128
    %v137 = vcombine.high %v135, %v135
    %v146 = vpack.c.bf16 %v111, %v111
    %v147 = vpack.c.bf16 %v119, %v119
    %v148 = vpack.c.bf16 %v118, %v118
    %v149 = vpack.c.bf16 %v120, %v120
    %v150 = vpack.c.bf16 %v128, %v128
    %v151 = vpack.c.bf16 %v136, %v136
    %v152 = vpack.c.bf16 %v135, %v135
    %v153 = vpack.c.bf16 %v137, %v137
    %v154 = vld [vmem:[#allocation5] sm:$0xff]
    %v155 = vld [vmem:[#allocation5 + $0x8] sm:$0xff]
    %v156 = vld [vmem:[#allocation5 + $0x10] sm:$0xff]
    %v157 = vld [vmem:[#allocation5 + $0x18] sm:$0xff]
    %v158 = vld [vmem:[#allocation5 + $0x20] sm:$0xff]
    %v159 = vld [vmem:[#allocation5 + $0x28] sm:$0xff]
    %v160 = vld [vmem:[#allocation5 + $0x30] sm:$0xff]
    %v161 = vld [vmem:[#allocation5 + $0x38] sm:$0xff]
    %v162 = vld [vmem:[#allocation5 + $0x40] sm:$0xff]
    %v163 = vld [vmem:[#allocation5 + $0x48] sm:$0xff]
    %v164 = vld [vmem:[#allocation5 + $0x50] sm:$0xff]
    %v165 = vld [vmem:[#allocation5 + $0x58] sm:$0xff]
    %v166 = vld [vmem:[#allocation5 + $0x60] sm:$0xff]
    %v167 = vld [vmem:[#allocation5 + $0x68] sm:$0xff]
    %v168 = vld [vmem:[#allocation5 + $0x70] sm:$0xff]
    %v169 = vld [vmem:[#allocation5 + $0x78] sm:$0xff]
    %v170 = vld [vmem:[#allocation5 + $0x80] sm:$0xff]
    %v171 = vld [vmem:[#allocation5 + $0x88] sm:$0xff]
    %v172 = vld [vmem:[#allocation5 + $0x90] sm:$0xff]
    %v173 = vld [vmem:[#allocation5 + $0x98] sm:$0xff]
    %v174 = vld [vmem:[#allocation5 + $0xa0] sm:$0xff]
    %v175 = vld [vmem:[#allocation5 + $0xa8] sm:$0xff]
    %v176 = vld [vmem:[#allocation5 + $0xb0] sm:$0xff]
    %v177 = vld [vmem:[#allocation5 + $0xb8] sm:$0xff]
    %v178 = vld [vmem:[#allocation5 + $0xc0] sm:$0xff]
    %v179 = vld [vmem:[#allocation5 + $0xc8] sm:$0xff]
    %v180 = vld [vmem:[#allocation5 + $0xd0] sm:$0xff]
    %v181 = vld [vmem:[#allocation5 + $0xd8] sm:$0xff]
    %v182 = vld [vmem:[#allocation5 + $0xe0] sm:$0xff]
    %v183 = vld [vmem:[#allocation5 + $0xe8] sm:$0xff]
    %v184 = vld [vmem:[#allocation5 + $0xf0] sm:$0xff]
    %v185 = vld [vmem:[#allocation5 + $0xf8] sm:$0xff]
    %v186 = vld [vmem:[#allocation5 + $0x100] sm:$0xff]
    %v187 = vld [vmem:[#allocation5 + $0x108] sm:$0xff]
    %v188 = vld [vmem:[#allocation5 + $0x110] sm:$0xff]
    %v189 = vld [vmem:[#allocation5 + $0x118] sm:$0xff]
    %v190 = vld [vmem:[#allocation5 + $0x120] sm:$0xff]
    %v191 = vld [vmem:[#allocation5 + $0x128] sm:$0xff]
    %v192 = vld [vmem:[#allocation5 + $0x130] sm:$0xff]
    %v193 = vld [vmem:[#allocation5 + $0x138] sm:$0xff]
    %v194 = vld [vmem:[#allocation5 + $0x140] sm:$0xff]
    %v195 = vld [vmem:[#allocation5 + $0x148] sm:$0xff]
    %v196 = vld [vmem:[#allocation5 + $0x150] sm:$0xff]
    %v197 = vld [vmem:[#allocation5 + $0x158] sm:$0xff]
    %v198 = vld [vmem:[#allocation5 + $0x160] sm:$0xff]
    %v199 = vld [vmem:[#allocation5 + $0x168] sm:$0xff]
    %v200 = vld [vmem:[#allocation5 + $0x170] sm:$0xff]
    %v201 = vld [vmem:[#allocation5 + $0x178] sm:$0xff]
    %v202 = vld [vmem:[#allocation5 + $0x180] sm:$0xff]
    %v203 = vld [vmem:[#allocation5 + $0x188] sm:$0xff]
    %v204 = vld [vmem:[#allocation5 + $0x190] sm:$0xff]
    %v205 = vld [vmem:[#allocation5 + $0x198] sm:$0xff]
    %v206 = vld [vmem:[#allocation5 + $0x1a0] sm:$0xff]
    %v207 = vld [vmem:[#allocation5 + $0x1a8] sm:$0xff]
    %v208 = vld [vmem:[#allocation5 + $0x1b0] sm:$0xff]
    %v209 = vld [vmem:[#allocation5 + $0x1b8] sm:$0xff]
    %v210 = vld [vmem:[#allocation5 + $0x1c0] sm:$0xff]
    %v211 = vld [vmem:[#allocation5 + $0x1c8] sm:$0xff]
    %v212 = vld [vmem:[#allocation5 + $0x1d0] sm:$0xff]
    %v213 = vld [vmem:[#allocation5 + $0x1d8] sm:$0xff]
    %v214 = vld [vmem:[#allocation5 + $0x1e0] sm:$0xff]
    %v215 = vld [vmem:[#allocation5 + $0x1e8] sm:$0xff]
    %v216 = vld [vmem:[#allocation5 + $0x1f0] sm:$0xff]
    %v217 = vld [vmem:[#allocation5 + $0x1f8] sm:$0xff]
    %v218 = vld [vmem:[#allocation5 + $0x200] sm:$0xff]
    %v219 = vld [vmem:[#allocation5 + $0x208] sm:$0xff]
    %v220 = vld [vmem:[#allocation5 + $0x210] sm:$0xff]
    %v221 = vld [vmem:[#allocation5 + $0x218] sm:$0xff]
    %v222 = vld [vmem:[#allocation5 + $0x220] sm:$0xff]
    %v223 = vld [vmem:[#allocation5 + $0x228] sm:$0xff]
    %v224 = vld [vmem:[#allocation5 + $0x230] sm:$0xff]
    %v225 = vld [vmem:[#allocation5 + $0x238] sm:$0xff]
    %v226 = vld [vmem:[#allocation5 + $0x240] sm:$0xff]
    %v227 = vld [vmem:[#allocation5 + $0x248] sm:$0xff]
    %v228 = vld [vmem:[#allocation5 + $0x250] sm:$0xff]
    %v229 = vld [vmem:[#allocation5 + $0x258] sm:$0xff]
    %v230 = vld [vmem:[#allocation5 + $0x260] sm:$0xff]
    %v231 = vld [vmem:[#allocation5 + $0x268] sm:$0xff]
    %v232 = vld [vmem:[#allocation5 + $0x270] sm:$0xff]
    %v233 = vld [vmem:[#allocation5 + $0x278] sm:$0xff]
    %v234 = vld [vmem:[#allocation5 + $0x280] sm:$0xff]
    %v235 = vld [vmem:[#allocation5 + $0x288] sm:$0xff]
    %v236 = vld [vmem:[#allocation5 + $0x290] sm:$0xff]
    %v237 = vld [vmem:[#allocation5 + $0x298] sm:$0xff]
    %v238 = vld [vmem:[#allocation5 + $0x2a0] sm:$0xff]
    %v239 = vld [vmem:[#allocation5 + $0x2a8] sm:$0xff]
    %v240 = vld [vmem:[#allocation5 + $0x2b0] sm:$0xff]
    %v241 = vld [vmem:[#allocation5 + $0x2b8] sm:$0xff]
    %v242 = vld [vmem:[#allocation5 + $0x2c0] sm:$0xff]
    %v243 = vld [vmem:[#allocation5 + $0x2c8] sm:$0xff]
    %v244 = vld [vmem:[#allocation5 + $0x2d0] sm:$0xff]
    %v245 = vld [vmem:[#allocation5 + $0x2d8] sm:$0xff]
    %v246 = vld [vmem:[#allocation5 + $0x2e0] sm:$0xff]
    %v247 = vld [vmem:[#allocation5 + $0x2e8] sm:$0xff]
    %v248 = vld [vmem:[#allocation5 + $0x2f0] sm:$0xff]
    %v249 = vld [vmem:[#allocation5 + $0x2f8] sm:$0xff]
    %v250 = vld [vmem:[#allocation5 + $0x300] sm:$0xff]
    %v251 = vld [vmem:[#allocation5 + $0x308] sm:$0xff]
    %v252 = vld [vmem:[#allocation5 + $0x310] sm:$0xff]
    %v253 = vld [vmem:[#allocation5 + $0x318] sm:$0xff]
    %v254 = vld [vmem:[#allocation5 + $0x320] sm:$0xff]
    %v255 = vld [vmem:[#allocation5 + $0x328] sm:$0xff]
    %v256 = vld [vmem:[#allocation5 + $0x330] sm:$0xff]
    %v257 = vld [vmem:[#allocation5 + $0x338] sm:$0xff]
    %v258 = vld [vmem:[#allocation5 + $0x340] sm:$0xff]
    %v259 = vld [vmem:[#allocation5 + $0x348] sm:$0xff]
    %v260 = vld [vmem:[#allocation5 + $0x350] sm:$0xff]
    %v261 = vld [vmem:[#allocation5 + $0x358] sm:$0xff]
    %v262 = vld [vmem:[#allocation5 + $0x360] sm:$0xff]
    %v263 = vld [vmem:[#allocation5 + $0x368] sm:$0xff]
    %v264 = vld [vmem:[#allocation5 + $0x370] sm:$0xff]
    %v265 = vld [vmem:[#allocation5 + $0x378] sm:$0xff]
    %v266 = vld [vmem:[#allocation5 + $0x380] sm:$0xff]
    %v267 = vld [vmem:[#allocation5 + $0x388] sm:$0xff]
    %v268 = vld [vmem:[#allocation5 + $0x390] sm:$0xff]
    %v269 = vld [vmem:[#allocation5 + $0x398] sm:$0xff]
    %v270 = vld [vmem:[#allocation5 + $0x3a0] sm:$0xff]
    %v271 = vld [vmem:[#allocation5 + $0x3a8] sm:$0xff]
    %v272 = vld [vmem:[#allocation5 + $0x3b0] sm:$0xff]
    %v273 = vld [vmem:[#allocation5 + $0x3b8] sm:$0xff]
    %v274 = vld [vmem:[#allocation5 + $0x3c0] sm:$0xff]
    %v275 = vld [vmem:[#allocation5 + $0x3c8] sm:$0xff]
    %v276 = vld [vmem:[#allocation5 + $0x3d0] sm:$0xff]
    %v277 = vld [vmem:[#allocation5 + $0x3d8] sm:$0xff]
    %v278 = vld [vmem:[#allocation5 + $0x3e0] sm:$0xff]
    %v279 = vld [vmem:[#allocation5 + $0x3e8] sm:$0xff]
    %v280 = vld [vmem:[#allocation5 + $0x3f0] sm:$0xff]
    %v281 = vld [vmem:[#allocation5 + $0x3f8] sm:$0xff]
    %v282 = vld [vmem:[#allocation5 + $0x400] sm:$0xff]
    %v283 = vld [vmem:[#allocation5 + $0x408] sm:$0xff]
    %v284 = vld [vmem:[#allocation5 + $0x410] sm:$0xff]
    %v285 = vld [vmem:[#allocation5 + $0x418] sm:$0xff]
    %v286 = vld [vmem:[#allocation5 + $0x420] sm:$0xff]
    %v287 = vld [vmem:[#allocation5 + $0x428] sm:$0xff]
    %v288 = vld [vmem:[#allocation5 + $0x430] sm:$0xff]
    %v289 = vld [vmem:[#allocation5 + $0x438] sm:$0xff]
    %v290 = vld [vmem:[#allocation5 + $0x440] sm:$0xff]
    %v291 = vld [vmem:[#allocation5 + $0x448] sm:$0xff]
    %v292 = vld [vmem:[#allocation5 + $0x450] sm:$0xff]
    %v293 = vld [vmem:[#allocation5 + $0x458] sm:$0xff]
    %v294 = vld [vmem:[#allocation5 + $0x460] sm:$0xff]
    %v295 = vld [vmem:[#allocation5 + $0x468] sm:$0xff]
    %v296 = vld [vmem:[#allocation5 + $0x470] sm:$0xff]
    %v297 = vld [vmem:[#allocation5 + $0x478] sm:$0xff]
    %v298 = vld [vmem:[#allocation5 + $0x480] sm:$0xff]
    %v299 = vld [vmem:[#allocation5 + $0x488] sm:$0xff]
    %v300 = vld [vmem:[#allocation5 + $0x490] sm:$0xff]
    %v301 = vld [vmem:[#allocation5 + $0x498] sm:$0xff]
    %v302 = vld [vmem:[#allocation5 + $0x4a0] sm:$0xff]
    %v303 = vld [vmem:[#allocation5 + $0x4a8] sm:$0xff]
    %v304 = vld [vmem:[#allocation5 + $0x4b0] sm:$0xff]
    %v305 = vld [vmem:[#allocation5 + $0x4b8] sm:$0xff]
    %v306 = vld [vmem:[#allocation5 + $0x4c0] sm:$0xff]
    %v307 = vld [vmem:[#allocation5 + $0x4c8] sm:$0xff]
    %v308 = vld [vmem:[#allocation5 + $0x4d0] sm:$0xff]
    %v309 = vld [vmem:[#allocation5 + $0x4d8] sm:$0xff]
    %v310 = vld [vmem:[#allocation5 + $0x4e0] sm:$0xff]
    %v311 = vld [vmem:[#allocation5 + $0x4e8] sm:$0xff]
    %v312 = vld [vmem:[#allocation5 + $0x4f0] sm:$0xff]
    %v313 = vld [vmem:[#allocation5 + $0x4f8] sm:$0xff]
    %v314 = vld [vmem:[#allocation5 + $0x500] sm:$0xff]
    %v315 = vld [vmem:[#allocation5 + $0x508] sm:$0xff]
    %v316 = vld [vmem:[#allocation5 + $0x510] sm:$0xff]
    %v317 = vld [vmem:[#allocation5 + $0x518] sm:$0xff]
    %v318 = vld [vmem:[#allocation5 + $0x520] sm:$0xff]
    %v319 = vld [vmem:[#allocation5 + $0x528] sm:$0xff]
    %v320 = vld [vmem:[#allocation5 + $0x530] sm:$0xff]
    %v321 = vld [vmem:[#allocation5 + $0x538] sm:$0xff]
    %v322 = vld [vmem:[#allocation5 + $0x540] sm:$0xff]
    %v323 = vld [vmem:[#allocation5 + $0x548] sm:$0xff]
    %v324 = vld [vmem:[#allocation5 + $0x550] sm:$0xff]
    %v325 = vld [vmem:[#allocation5 + $0x558] sm:$0xff]
    %v326 = vld [vmem:[#allocation5 + $0x560] sm:$0xff]
    %v327 = vld [vmem:[#allocation5 + $0x568] sm:$0xff]
    %v328 = vld [vmem:[#allocation5 + $0x570] sm:$0xff]
    %v329 = vld [vmem:[#allocation5 + $0x578] sm:$0xff]
    %v330 = vld [vmem:[#allocation5 + $0x580] sm:$0xff]
    %v331 = vld [vmem:[#allocation5 + $0x588] sm:$0xff]
    %v332 = vld [vmem:[#allocation5 + $0x590] sm:$0xff]
    %v333 = vld [vmem:[#allocation5 + $0x598] sm:$0xff]
    %v334 = vld [vmem:[#allocation5 + $0x5a0] sm:$0xff]
    %v335 = vld [vmem:[#allocation5 + $0x5a8] sm:$0xff]
    %v336 = vld [vmem:[#allocation5 + $0x5b0] sm:$0xff]
    %v337 = vld [vmem:[#allocation5 + $0x5b8] sm:$0xff]
    %v338 = vld [vmem:[#allocation5 + $0x5c0] sm:$0xff]
    %v339 = vld [vmem:[#allocation5 + $0x5c8] sm:$0xff]
    %v340 = vld [vmem:[#allocation5 + $0x5d0] sm:$0xff]
    %v341 = vld [vmem:[#allocation5 + $0x5d8] sm:$0xff]
    %v342 = vld [vmem:[#allocation5 + $0x5e0] sm:$0xff]
    %v343 = vld [vmem:[#allocation5 + $0x5e8] sm:$0xff]
    %v344 = vld [vmem:[#allocation5 + $0x5f0] sm:$0xff]
    %v345 = vld [vmem:[#allocation5 + $0x5f8] sm:$0xff]
    %v346 = vld [vmem:[#allocation5 + $0x600] sm:$0xff]
    %v347 = vld [vmem:[#allocation5 + $0x608] sm:$0xff]
    %v348 = vld [vmem:[#allocation5 + $0x610] sm:$0xff]
    %v349 = vld [vmem:[#allocation5 + $0x618] sm:$0xff]
    %v350 = vld [vmem:[#allocation5 + $0x620] sm:$0xff]
    %v351 = vld [vmem:[#allocation5 + $0x628] sm:$0xff]
    %v352 = vld [vmem:[#allocation5 + $0x630] sm:$0xff]
    %v353 = vld [vmem:[#allocation5 + $0x638] sm:$0xff]
    %v354 = vld [vmem:[#allocation5 + $0x640] sm:$0xff]
    %v355 = vld [vmem:[#allocation5 + $0x648] sm:$0xff]
    %v356 = vld [vmem:[#allocation5 + $0x650] sm:$0xff]
    %v357 = vld [vmem:[#allocation5 + $0x658] sm:$0xff]
    %v358 = vld [vmem:[#allocation5 + $0x660] sm:$0xff]
    %v359 = vld [vmem:[#allocation5 + $0x668] sm:$0xff]
    %v360 = vld [vmem:[#allocation5 + $0x670] sm:$0xff]
    %v361 = vld [vmem:[#allocation5 + $0x678] sm:$0xff]
    %v362 = vld [vmem:[#allocation5 + $0x680] sm:$0xff]
    %v363 = vld [vmem:[#allocation5 + $0x688] sm:$0xff]
    %v364 = vld [vmem:[#allocation5 + $0x690] sm:$0xff]
    %v365 = vld [vmem:[#allocation5 + $0x698] sm:$0xff]
    %v366 = vld [vmem:[#allocation5 + $0x6a0] sm:$0xff]
    %v367 = vld [vmem:[#allocation5 + $0x6a8] sm:$0xff]
    %v368 = vld [vmem:[#allocation5 + $0x6b0] sm:$0xff]
    %v369 = vld [vmem:[#allocation5 + $0x6b8] sm:$0xff]
    %v370 = vld [vmem:[#allocation5 + $0x6c0] sm:$0xff]
    %v371 = vld [vmem:[#allocation5 + $0x6c8] sm:$0xff]
    %v372 = vld [vmem:[#allocation5 + $0x6d0] sm:$0xff]
    %v373 = vld [vmem:[#allocation5 + $0x6d8] sm:$0xff]
    %v374 = vld [vmem:[#allocation5 + $0x6e0] sm:$0xff]
    %v375 = vld [vmem:[#allocation5 + $0x6e8] sm:$0xff]
    %v376 = vld [vmem:[#allocation5 + $0x6f0] sm:$0xff]
    %v377 = vld [vmem:[#allocation5 + $0x6f8] sm:$0xff]
    %v378 = vld [vmem:[#allocation5 + $0x700] sm:$0xff]
    %v379 = vld [vmem:[#allocation5 + $0x708] sm:$0xff]
    %v380 = vld [vmem:[#allocation5 + $0x710] sm:$0xff]
    %v381 = vld [vmem:[#allocation5 + $0x718] sm:$0xff]
    %v382 = vld [vmem:[#allocation5 + $0x720] sm:$0xff]
    %v383 = vld [vmem:[#allocation5 + $0x728] sm:$0xff]
    %v384 = vld [vmem:[#allocation5 + $0x730] sm:$0xff]
    %v385 = vld [vmem:[#allocation5 + $0x738] sm:$0xff]
    %v386 = vld [vmem:[#allocation5 + $0x740] sm:$0xff]
    %v387 = vld [vmem:[#allocation5 + $0x748] sm:$0xff]
    %v388 = vld [vmem:[#allocation5 + $0x750] sm:$0xff]
    %v389 = vld [vmem:[#allocation5 + $0x758] sm:$0xff]
    %v390 = vld [vmem:[#allocation5 + $0x760] sm:$0xff]
    %v391 = vld [vmem:[#allocation5 + $0x768] sm:$0xff]
    %v392 = vld [vmem:[#allocation5 + $0x770] sm:$0xff]
    %v393 = vld [vmem:[#allocation5 + $0x778] sm:$0xff]
    %v394 = vld [vmem:[#allocation5 + $0x780] sm:$0xff]
    %v395 = vld [vmem:[#allocation5 + $0x788] sm:$0xff]
    %v396 = vld [vmem:[#allocation5 + $0x790] sm:$0xff]
    %v397 = vld [vmem:[#allocation5 + $0x798] sm:$0xff]
    %v398 = vld [vmem:[#allocation5 + $0x7a0] sm:$0xff]
    %v399 = vld [vmem:[#allocation5 + $0x7a8] sm:$0xff]
    %v400 = vld [vmem:[#allocation5 + $0x7b0] sm:$0xff]
    %v401 = vld [vmem:[#allocation5 + $0x7b8] sm:$0xff]
    %v402 = vld [vmem:[#allocation5 + $0x7c0] sm:$0xff]
    %v403 = vld [vmem:[#allocation5 + $0x7c8] sm:$0xff]
    %v404 = vld [vmem:[#allocation5 + $0x7d0] sm:$0xff]
    %v405 = vld [vmem:[#allocation5 + $0x7d8] sm:$0xff]
    %v406 = vld [vmem:[#allocation5 + $0x7e0] sm:$0xff]
    %v407 = vld [vmem:[#allocation5 + $0x7e8] sm:$0xff]
    %v408 = vld [vmem:[#allocation5 + $0x7f0] sm:$0xff]
    %v409 = vld [vmem:[#allocation5 + $0x7f8] sm:$0xff]
    %v410 = vld [vmem:[%s2] sm:$0xf]
    %v412 = vlaneseq
    %v413 = vshrl.u32 %v412, 7
    %v414 = vsub.s32 0, %v413
    %v415 = vrot.slane %v410, %v414
    %v416 = vlaneseq
    %v417 = vshrl.u32 %v416, 7
    %v418 = vsub.s32 1, %v417
    %v419 = vrot.slane %v410, %v418
    %v420 = vlaneseq
    %v421 = vshrl.u32 %v420, 7
    %v422 = vsub.s32 2, %v421
    %v423 = vrot.slane %v410, %v422
    %v424 = vlaneseq
    %v425 = vshrl.u32 %v424, 7
    %v426 = vsub.s32 3, %v425
    %v427 = vrot.slane %v410, %v426
    %v688 = vunpack.c.l.b16 %v154
    %v689 = vunpack.c.h.b16 %v154
    %v690 = vunpack.c.l.b16 %v155
    %v691 = vunpack.c.h.b16 %v155
    %v692 = vunpack.c.l.b16 %v156
    %v693 = vunpack.c.h.b16 %v156
    %v694 = vunpack.c.l.b16 %v157
    %v695 = vunpack.c.h.b16 %v157
    %v696 = vunpack.c.l.b16 %v158
    %v697 = vunpack.c.h.b16 %v158
    %v698 = vunpack.c.l.b16 %v159
    %v699 = vunpack.c.h.b16 %v159
    %v700 = vunpack.c.l.b16 %v160
    %v701 = vunpack.c.h.b16 %v160
    %v702 = vunpack.c.l.b16 %v161
    %v703 = vunpack.c.h.b16 %v161
    %v704 = vunpack.c.l.b16 %v162
    %v705 = vunpack.c.h.b16 %v162
    %v706 = vunpack.c.l.b16 %v163
    %v707 = vunpack.c.h.b16 %v163
    %v708 = vunpack.c.l.b16 %v164
    %v709 = vunpack.c.h.b16 %v164
    %v710 = vunpack.c.l.b16 %v165
    %v711 = vunpack.c.h.b16 %v165
    %v712 = vunpack.c.l.b16 %v166
    %v713 = vunpack.c.h.b16 %v166
    %v714 = vunpack.c.l.b16 %v167
    %v715 = vunpack.c.h.b16 %v167
    %v716 = vunpack.c.l.b16 %v168
    %v717 = vunpack.c.h.b16 %v168
    %v718 = vunpack.c.l.b16 %v169
    %v719 = vunpack.c.h.b16 %v169
    %v720 = vunpack.c.l.b16 %v170
    %v721 = vunpack.c.h.b16 %v170
    %v722 = vunpack.c.l.b16 %v171
    %v723 = vunpack.c.h.b16 %v171
    %v724 = vunpack.c.l.b16 %v172
    %v725 = vunpack.c.h.b16 %v172
    %v726 = vunpack.c.l.b16 %v173
    %v727 = vunpack.c.h.b16 %v173
    %v728 = vunpack.c.l.b16 %v174
    %v729 = vunpack.c.h.b16 %v174
    %v730 = vunpack.c.l.b16 %v175
    %v731 = vunpack.c.h.b16 %v175
    %v732 = vunpack.c.l.b16 %v176
    %v733 = vunpack.c.h.b16 %v176
    %v734 = vunpack.c.l.b16 %v177
    %v735 = vunpack.c.h.b16 %v177
    %v736 = vunpack.c.l.b16 %v178
    %v737 = vunpack.c.h.b16 %v178
    %v738 = vunpack.c.l.b16 %v179
    %v739 = vunpack.c.h.b16 %v179
    %v740 = vunpack.c.l.b16 %v180
    %v741 = vunpack.c.h.b16 %v180
    %v742 = vunpack.c.l.b16 %v181
    %v743 = vunpack.c.h.b16 %v181
    %v744 = vunpack.c.l.b16 %v182
    %v745 = vunpack.c.h.b16 %v182
    %v746 = vunpack.c.l.b16 %v183
    %v747 = vunpack.c.h.b16 %v183
    %v748 = vunpack.c.l.b16 %v184
    %v749 = vunpack.c.h.b16 %v184
    %v750 = vunpack.c.l.b16 %v185
    %v751 = vunpack.c.h.b16 %v185
    %v752 = vunpack.c.l.b16 %v186
    %v753 = vunpack.c.h.b16 %v186
    %v754 = vunpack.c.l.b16 %v187
    %v755 = vunpack.c.h.b16 %v187
    %v756 = vunpack.c.l.b16 %v188
    %v757 = vunpack.c.h.b16 %v188
    %v758 = vunpack.c.l.b16 %v189
    %v759 = vunpack.c.h.b16 %v189
    %v760 = vunpack.c.l.b16 %v190
    %v761 = vunpack.c.h.b16 %v190
    %v762 = vunpack.c.l.b16 %v191
    %v763 = vunpack.c.h.b16 %v191
    %v764 = vunpack.c.l.b16 %v192
    %v765 = vunpack.c.h.b16 %v192
    %v766 = vunpack.c.l.b16 %v193
    %v767 = vunpack.c.h.b16 %v193
    %v768 = vunpack.c.l.b16 %v194
    %v769 = vunpack.c.h.b16 %v194
    %v770 = vunpack.c.l.b16 %v195
    %v771 = vunpack.c.h.b16 %v195
    %v772 = vunpack.c.l.b16 %v196
    %v773 = vunpack.c.h.b16 %v196
    %v774 = vunpack.c.l.b16 %v197
    %v775 = vunpack.c.h.b16 %v197
    %v776 = vunpack.c.l.b16 %v198
    %v777 = vunpack.c.h.b16 %v198
    %v778 = vunpack.c.l.b16 %v199
    %v779 = vunpack.c.h.b16 %v199
    %v780 = vunpack.c.l.b16 %v200
    %v781 = vunpack.c.h.b16 %v200
    %v782 = vunpack.c.l.b16 %v201
    %v783 = vunpack.c.h.b16 %v201
    %v784 = vunpack.c.l.b16 %v202
    %v785 = vunpack.c.h.b16 %v202
    %v786 = vunpack.c.l.b16 %v203
    %v787 = vunpack.c.h.b16 %v203
    %v788 = vunpack.c.l.b16 %v204
    %v789 = vunpack.c.h.b16 %v204
    %v790 = vunpack.c.l.b16 %v205
    %v791 = vunpack.c.h.b16 %v205
    %v792 = vunpack.c.l.b16 %v206
    %v793 = vunpack.c.h.b16 %v206
    %v794 = vunpack.c.l.b16 %v207
    %v795 = vunpack.c.h.b16 %v207
    %v796 = vunpack.c.l.b16 %v208
    %v797 = vunpack.c.h.b16 %v208
    %v798 = vunpack.c.l.b16 %v209
    %v799 = vunpack.c.h.b16 %v209
    %v800 = vunpack.c.l.b16 %v210
    %v801 = vunpack.c.h.b16 %v210
    %v802 = vunpack.c.l.b16 %v211
    %v803 = vunpack.c.h.b16 %v211
    %v804 = vunpack.c.l.b16 %v212
    %v805 = vunpack.c.h.b16 %v212
    %v806 = vunpack.c.l.b16 %v213
    %v807 = vunpack.c.h.b16 %v213
    %v808 = vunpack.c.l.b16 %v214
    %v809 = vunpack.c.h.b16 %v214
    %v810 = vunpack.c.l.b16 %v215
    %v811 = vunpack.c.h.b16 %v215
    %v812 = vunpack.c.l.b16 %v216
    %v813 = vunpack.c.h.b16 %v216
    %v814 = vunpack.c.l.b16 %v217
    %v815 = vunpack.c.h.b16 %v217
    %v816 = vunpack.c.l.b16 %v218
    %v817 = vunpack.c.h.b16 %v218
    %v818 = vunpack.c.l.b16 %v219
    %v819 = vunpack.c.h.b16 %v219
    %v820 = vunpack.c.l.b16 %v220
    %v821 = vunpack.c.h.b16 %v220
    %v822 = vunpack.c.l.b16 %v221
    %v823 = vunpack.c.h.b16 %v221
    %v824 = vunpack.c.l.b16 %v222
    %v825 = vunpack.c.h.b16 %v222
    %v826 = vunpack.c.l.b16 %v223
    %v827 = vunpack.c.h.b16 %v223
    %v828 = vunpack.c.l.b16 %v224
    %v829 = vunpack.c.h.b16 %v224
    %v830 = vunpack.c.l.b16 %v225
    %v831 = vunpack.c.h.b16 %v225
    %v832 = vunpack.c.l.b16 %v226
    %v833 = vunpack.c.h.b16 %v226
    %v834 = vunpack.c.l.b16 %v227
    %v835 = vunpack.c.h.b16 %v227
    %v836 = vunpack.c.l.b16 %v228
    %v837 = vunpack.c.h.b16 %v228
    %v838 = vunpack.c.l.b16 %v229
    %v839 = vunpack.c.h.b16 %v229
    %v840 = vunpack.c.l.b16 %v230
    %v841 = vunpack.c.h.b16 %v230
    %v842 = vunpack.c.l.b16 %v231
    %v843 = vunpack.c.h.b16 %v231
    %v844 = vunpack.c.l.b16 %v232
    %v845 = vunpack.c.h.b16 %v232
    %v846 = vunpack.c.l.b16 %v233
    %v847 = vunpack.c.h.b16 %v233
    %v848 = vunpack.c.l.b16 %v234
    %v849 = vunpack.c.h.b16 %v234
    %v850 = vunpack.c.l.b16 %v235
    %v851 = vunpack.c.h.b16 %v235
    %v852 = vunpack.c.l.b16 %v236
    %v853 = vunpack.c.h.b16 %v236
    %v854 = vunpack.c.l.b16 %v237
    %v855 = vunpack.c.h.b16 %v237
    %v856 = vunpack.c.l.b16 %v238
    %v857 = vunpack.c.h.b16 %v238
    %v858 = vunpack.c.l.b16 %v239
    %v859 = vunpack.c.h.b16 %v239
    %v860 = vunpack.c.l.b16 %v240
    %v861 = vunpack.c.h.b16 %v240
    %v862 = vunpack.c.l.b16 %v241
    %v863 = vunpack.c.h.b16 %v241
    %v864 = vunpack.c.l.b16 %v242
    %v865 = vunpack.c.h.b16 %v242
    %v866 = vunpack.c.l.b16 %v243
    %v867 = vunpack.c.h.b16 %v243
    %v868 = vunpack.c.l.b16 %v244
    %v869 = vunpack.c.h.b16 %v244
    %v870 = vunpack.c.l.b16 %v245
    %v871 = vunpack.c.h.b16 %v245
    %v872 = vunpack.c.l.b16 %v246
    %v873 = vunpack.c.h.b16 %v246
    %v874 = vunpack.c.l.b16 %v247
    %v875 = vunpack.c.h.b16 %v247
    %v876 = vunpack.c.l.b16 %v248
    %v877 = vunpack.c.h.b16 %v248
    %v878 = vunpack.c.l.b16 %v249
    %v879 = vunpack.c.h.b16 %v249
    %v880 = vunpack.c.l.b16 %v250
    %v881 = vunpack.c.h.b16 %v250
    %v882 = vunpack.c.l.b16 %v251
    %v883 = vunpack.c.h.b16 %v251
    %v884 = vunpack.c.l.b16 %v252
    %v885 = vunpack.c.h.b16 %v252
    %v886 = vunpack.c.l.b16 %v253
    %v887 = vunpack.c.h.b16 %v253
    %v888 = vunpack.c.l.b16 %v254
    %v889 = vunpack.c.h.b16 %v254
    %v890 = vunpack.c.l.b16 %v255
    %v891 = vunpack.c.h.b16 %v255
    %v892 = vunpack.c.l.b16 %v256
    %v893 = vunpack.c.h.b16 %v256
    %v894 = vunpack.c.l.b16 %v257
    %v895 = vunpack.c.h.b16 %v257
    %v896 = vunpack.c.l.b16 %v258
    %v897 = vunpack.c.h.b16 %v258
    %v898 = vunpack.c.l.b16 %v259
    %v899 = vunpack.c.h.b16 %v259
    %v900 = vunpack.c.l.b16 %v260
    %v901 = vunpack.c.h.b16 %v260
    %v902 = vunpack.c.l.b16 %v261
    %v903 = vunpack.c.h.b16 %v261
    %v904 = vunpack.c.l.b16 %v262
    %v905 = vunpack.c.h.b16 %v262
    %v906 = vunpack.c.l.b16 %v263
    %v907 = vunpack.c.h.b16 %v263
    %v908 = vunpack.c.l.b16 %v264
    %v909 = vunpack.c.h.b16 %v264
    %v910 = vunpack.c.l.b16 %v265
    %v911 = vunpack.c.h.b16 %v265
    %v912 = vunpack.c.l.b16 %v266
    %v913 = vunpack.c.h.b16 %v266
    %v914 = vunpack.c.l.b16 %v267
    %v915 = vunpack.c.h.b16 %v267
    %v916 = vunpack.c.l.b16 %v268
    %v917 = vunpack.c.h.b16 %v268
    %v918 = vunpack.c.l.b16 %v269
    %v919 = vunpack.c.h.b16 %v269
    %v920 = vunpack.c.l.b16 %v270
    %v921 = vunpack.c.h.b16 %v270
    %v922 = vunpack.c.l.b16 %v271
    %v923 = vunpack.c.h.b16 %v271
    %v924 = vunpack.c.l.b16 %v272
    %v925 = vunpack.c.h.b16 %v272
    %v926 = vunpack.c.l.b16 %v273
    %v927 = vunpack.c.h.b16 %v273
    %v928 = vunpack.c.l.b16 %v274
    %v929 = vunpack.c.h.b16 %v274
    %v930 = vunpack.c.l.b16 %v275
    %v931 = vunpack.c.h.b16 %v275
    %v932 = vunpack.c.l.b16 %v276
    %v933 = vunpack.c.h.b16 %v276
    %v934 = vunpack.c.l.b16 %v277
    %v935 = vunpack.c.h.b16 %v277
    %v936 = vunpack.c.l.b16 %v278
    %v937 = vunpack.c.h.b16 %v278
    %v938 = vunpack.c.l.b16 %v279
    %v939 = vunpack.c.h.b16 %v279
    %v940 = vunpack.c.l.b16 %v280
    %v941 = vunpack.c.h.b16 %v280
    %v942 = vunpack.c.l.b16 %v281
    %v943 = vunpack.c.h.b16 %v281
    %v944 = vunpack.c.l.b16 %v282
    %v945 = vunpack.c.h.b16 %v282
    %v946 = vunpack.c.l.b16 %v283
    %v947 = vunpack.c.h.b16 %v283
    %v948 = vunpack.c.l.b16 %v284
    %v949 = vunpack.c.h.b16 %v284
    %v950 = vunpack.c.l.b16 %v285
    %v951 = vunpack.c.h.b16 %v285
    %v952 = vunpack.c.l.b16 %v286
    %v953 = vunpack.c.h.b16 %v286
    %v954 = vunpack.c.l.b16 %v287
    %v955 = vunpack.c.h.b16 %v287
    %v956 = vunpack.c.l.b16 %v288
    %v957 = vunpack.c.h.b16 %v288
    %v958 = vunpack.c.l.b16 %v289
    %v959 = vunpack.c.h.b16 %v289
    %v960 = vunpack.c.l.b16 %v290
    %v961 = vunpack.c.h.b16 %v290
    %v962 = vunpack.c.l.b16 %v291
    %v963 = vunpack.c.h.b16 %v291
    %v964 = vunpack.c.l.b16 %v292
    %v965 = vunpack.c.h.b16 %v292
    %v966 = vunpack.c.l.b16 %v293
    %v967 = vunpack.c.h.b16 %v293
    %v968 = vunpack.c.l.b16 %v294
    %v969 = vunpack.c.h.b16 %v294
    %v970 = vunpack.c.l.b16 %v295
    %v971 = vunpack.c.h.b16 %v295
    %v972 = vunpack.c.l.b16 %v296
    %v973 = vunpack.c.h.b16 %v296
    %v974 = vunpack.c.l.b16 %v297
    %v975 = vunpack.c.h.b16 %v297
    %v976 = vunpack.c.l.b16 %v298
    %v977 = vunpack.c.h.b16 %v298
    %v978 = vunpack.c.l.b16 %v299
    %v979 = vunpack.c.h.b16 %v299
    %v980 = vunpack.c.l.b16 %v300
    %v981 = vunpack.c.h.b16 %v300
    %v982 = vunpack.c.l.b16 %v301
    %v983 = vunpack.c.h.b16 %v301
    %v984 = vunpack.c.l.b16 %v302
    %v985 = vunpack.c.h.b16 %v302
    %v986 = vunpack.c.l.b16 %v303
    %v987 = vunpack.c.h.b16 %v303
    %v988 = vunpack.c.l.b16 %v304
    %v989 = vunpack.c.h.b16 %v304
    %v990 = vunpack.c.l.b16 %v305
    %v991 = vunpack.c.h.b16 %v305
    %v992 = vunpack.c.l.b16 %v306
    %v993 = vunpack.c.h.b16 %v306
    %v994 = vunpack.c.l.b16 %v307
    %v995 = vunpack.c.h.b16 %v307
    %v996 = vunpack.c.l.b16 %v308
    %v997 = vunpack.c.h.b16 %v308
    %v998 = vunpack.c.l.b16 %v309
    %v999 = vunpack.c.h.b16 %v309
    %v1000 = vunpack.c.l.b16 %v310
    %v1001 = vunpack.c.h.b16 %v310
    %v1002 = vunpack.c.l.b16 %v311
    %v1003 = vunpack.c.h.b16 %v311
    %v1004 = vunpack.c.l.b16 %v312
    %v1005 = vunpack.c.h.b16 %v312
    %v1006 = vunpack.c.l.b16 %v313
    %v1007 = vunpack.c.h.b16 %v313
    %v1008 = vunpack.c.l.b16 %v314
    %v1009 = vunpack.c.h.b16 %v314
    %v1010 = vunpack.c.l.b16 %v315
    %v1011 = vunpack.c.h.b16 %v315
    %v1012 = vunpack.c.l.b16 %v316
    %v1013 = vunpack.c.h.b16 %v316
    %v1014 = vunpack.c.l.b16 %v317
    %v1015 = vunpack.c.h.b16 %v317
    %v1016 = vunpack.c.l.b16 %v318
    %v1017 = vunpack.c.h.b16 %v318
    %v1018 = vunpack.c.l.b16 %v319
    %v1019 = vunpack.c.h.b16 %v319
    %v1020 = vunpack.c.l.b16 %v320
    %v1021 = vunpack.c.h.b16 %v320
    %v1022 = vunpack.c.l.b16 %v321
    %v1023 = vunpack.c.h.b16 %v321
    %v1024 = vunpack.c.l.b16 %v322
    %v1025 = vunpack.c.h.b16 %v322
    %v1026 = vunpack.c.l.b16 %v323
    %v1027 = vunpack.c.h.b16 %v323
    %v1028 = vunpack.c.l.b16 %v324
    %v1029 = vunpack.c.h.b16 %v324
    %v1030 = vunpack.c.l.b16 %v325
    %v1031 = vunpack.c.h.b16 %v325
    %v1032 = vunpack.c.l.b16 %v326
    %v1033 = vunpack.c.h.b16 %v326
    %v1034 = vunpack.c.l.b16 %v327
    %v1035 = vunpack.c.h.b16 %v327
    %v1036 = vunpack.c.l.b16 %v328
    %v1037 = vunpack.c.h.b16 %v328
    %v1038 = vunpack.c.l.b16 %v329
    %v1039 = vunpack.c.h.b16 %v329
    %v1040 = vunpack.c.l.b16 %v330
    %v1041 = vunpack.c.h.b16 %v330
    %v1042 = vunpack.c.l.b16 %v331
    %v1043 = vunpack.c.h.b16 %v331
    %v1044 = vunpack.c.l.b16 %v332
    %v1045 = vunpack.c.h.b16 %v332
    %v1046 = vunpack.c.l.b16 %v333
    %v1047 = vunpack.c.h.b16 %v333
    %v1048 = vunpack.c.l.b16 %v334
    %v1049 = vunpack.c.h.b16 %v334
    %v1050 = vunpack.c.l.b16 %v335
    %v1051 = vunpack.c.h.b16 %v335
    %v1052 = vunpack.c.l.b16 %v336
    %v1053 = vunpack.c.h.b16 %v336
    %v1054 = vunpack.c.l.b16 %v337
    %v1055 = vunpack.c.h.b16 %v337
    %v1056 = vunpack.c.l.b16 %v338
    %v1057 = vunpack.c.h.b16 %v338
    %v1058 = vunpack.c.l.b16 %v339
    %v1059 = vunpack.c.h.b16 %v339
    %v1060 = vunpack.c.l.b16 %v340
    %v1061 = vunpack.c.h.b16 %v340
    %v1062 = vunpack.c.l.b16 %v341
    %v1063 = vunpack.c.h.b16 %v341
    %v1064 = vunpack.c.l.b16 %v342
    %v1065 = vunpack.c.h.b16 %v342
    %v1066 = vunpack.c.l.b16 %v343
    %v1067 = vunpack.c.h.b16 %v343
    %v1068 = vunpack.c.l.b16 %v344
    %v1069 = vunpack.c.h.b16 %v344
    %v1070 = vunpack.c.l.b16 %v345
    %v1071 = vunpack.c.h.b16 %v345
    %v1072 = vunpack.c.l.b16 %v346
    %v1073 = vunpack.c.h.b16 %v346
    %v1074 = vunpack.c.l.b16 %v347
    %v1075 = vunpack.c.h.b16 %v347
    %v1076 = vunpack.c.l.b16 %v348
    %v1077 = vunpack.c.h.b16 %v348
    %v1078 = vunpack.c.l.b16 %v349
    %v1079 = vunpack.c.h.b16 %v349
    %v1080 = vunpack.c.l.b16 %v350
    %v1081 = vunpack.c.h.b16 %v350
    %v1082 = vunpack.c.l.b16 %v351
    %v1083 = vunpack.c.h.b16 %v351
    %v1084 = vunpack.c.l.b16 %v352
    %v1085 = vunpack.c.h.b16 %v352
    %v1086 = vunpack.c.l.b16 %v353
    %v1087 = vunpack.c.h.b16 %v353
    %v1088 = vunpack.c.l.b16 %v354
    %v1089 = vunpack.c.h.b16 %v354
    %v1090 = vunpack.c.l.b16 %v355
    %v1091 = vunpack.c.h.b16 %v355
    %v1092 = vunpack.c.l.b16 %v356
    %v1093 = vunpack.c.h.b16 %v356
    %v1094 = vunpack.c.l.b16 %v357
    %v1095 = vunpack.c.h.b16 %v357
    %v1096 = vunpack.c.l.b16 %v358
    %v1097 = vunpack.c.h.b16 %v358
    %v1098 = vunpack.c.l.b16 %v359
    %v1099 = vunpack.c.h.b16 %v359
    %v1100 = vunpack.c.l.b16 %v360
    %v1101 = vunpack.c.h.b16 %v360
    %v1102 = vunpack.c.l.b16 %v361
    %v1103 = vunpack.c.h.b16 %v361
    %v1104 = vunpack.c.l.b16 %v362
    %v1105 = vunpack.c.h.b16 %v362
    %v1106 = vunpack.c.l.b16 %v363
    %v1107 = vunpack.c.h.b16 %v363
    %v1108 = vunpack.c.l.b16 %v364
    %v1109 = vunpack.c.h.b16 %v364
    %v1110 = vunpack.c.l.b16 %v365
    %v1111 = vunpack.c.h.b16 %v365
    %v1112 = vunpack.c.l.b16 %v366
    %v1113 = vunpack.c.h.b16 %v366
    %v1114 = vunpack.c.l.b16 %v367
    %v1115 = vunpack.c.h.b16 %v367
    %v1116 = vunpack.c.l.b16 %v368
    %v1117 = vunpack.c.h.b16 %v368
    %v1118 = vunpack.c.l.b16 %v369
    %v1119 = vunpack.c.h.b16 %v369
    %v1120 = vunpack.c.l.b16 %v370
    %v1121 = vunpack.c.h.b16 %v370
    %v1122 = vunpack.c.l.b16 %v371
    %v1123 = vunpack.c.h.b16 %v371
    %v1124 = vunpack.c.l.b16 %v372
    %v1125 = vunpack.c.h.b16 %v372
    %v1126 = vunpack.c.l.b16 %v373
    %v1127 = vunpack.c.h.b16 %v373
    %v1128 = vunpack.c.l.b16 %v374
    %v1129 = vunpack.c.h.b16 %v374
    %v1130 = vunpack.c.l.b16 %v375
    %v1131 = vunpack.c.h.b16 %v375
    %v1132 = vunpack.c.l.b16 %v376
    %v1133 = vunpack.c.h.b16 %v376
    %v1134 = vunpack.c.l.b16 %v377
    %v1135 = vunpack.c.h.b16 %v377
    %v1136 = vunpack.c.l.b16 %v378
    %v1137 = vunpack.c.h.b16 %v378
    %v1138 = vunpack.c.l.b16 %v379
    %v1139 = vunpack.c.h.b16 %v379
    %v1140 = vunpack.c.l.b16 %v380
    %v1141 = vunpack.c.h.b16 %v380
    %v1142 = vunpack.c.l.b16 %v381
    %v1143 = vunpack.c.h.b16 %v381
    %v1144 = vunpack.c.l.b16 %v382
    %v1145 = vunpack.c.h.b16 %v382
    %v1146 = vunpack.c.l.b16 %v383
    %v1147 = vunpack.c.h.b16 %v383
    %v1148 = vunpack.c.l.b16 %v384
    %v1149 = vunpack.c.h.b16 %v384
    %v1150 = vunpack.c.l.b16 %v385
    %v1151 = vunpack.c.h.b16 %v385
    %v1152 = vunpack.c.l.b16 %v386
    %v1153 = vunpack.c.h.b16 %v386
    %v1154 = vunpack.c.l.b16 %v387
    %v1155 = vunpack.c.h.b16 %v387
    %v1156 = vunpack.c.l.b16 %v388
    %v1157 = vunpack.c.h.b16 %v388
    %v1158 = vunpack.c.l.b16 %v389
    %v1159 = vunpack.c.h.b16 %v389
    %v1160 = vunpack.c.l.b16 %v390
    %v1161 = vunpack.c.h.b16 %v390
    %v1162 = vunpack.c.l.b16 %v391
    %v1163 = vunpack.c.h.b16 %v391
    %v1164 = vunpack.c.l.b16 %v392
    %v1165 = vunpack.c.h.b16 %v392
    %v1166 = vunpack.c.l.b16 %v393
    %v1167 = vunpack.c.h.b16 %v393
    %v1168 = vunpack.c.l.b16 %v394
    %v1169 = vunpack.c.h.b16 %v394
    %v1170 = vunpack.c.l.b16 %v395
    %v1171 = vunpack.c.h.b16 %v395
    %v1172 = vunpack.c.l.b16 %v396
    %v1173 = vunpack.c.h.b16 %v396
    %v1174 = vunpack.c.l.b16 %v397
    %v1175 = vunpack.c.h.b16 %v397
    %v1176 = vunpack.c.l.b16 %v398
    %v1177 = vunpack.c.h.b16 %v398
    %v1178 = vunpack.c.l.b16 %v399
    %v1179 = vunpack.c.h.b16 %v399
    %v1180 = vunpack.c.l.b16 %v400
    %v1181 = vunpack.c.h.b16 %v400
    %v1182 = vunpack.c.l.b16 %v401
    %v1183 = vunpack.c.h.b16 %v401
    %v1184 = vunpack.c.l.b16 %v402
    %v1185 = vunpack.c.h.b16 %v402
    %v1186 = vunpack.c.l.b16 %v403
    %v1187 = vunpack.c.h.b16 %v403
    %v1188 = vunpack.c.l.b16 %v404
    %v1189 = vunpack.c.h.b16 %v404
    %v1190 = vunpack.c.l.b16 %v405
    %v1191 = vunpack.c.h.b16 %v405
    %v1192 = vunpack.c.l.b16 %v406
    %v1193 = vunpack.c.h.b16 %v406
    %v1194 = vunpack.c.l.b16 %v407
    %v1195 = vunpack.c.h.b16 %v407
    %v1196 = vunpack.c.l.b16 %v408
    %v1197 = vunpack.c.h.b16 %v408
    %v1198 = vunpack.c.l.b16 %v409
    %v1199 = vunpack.c.h.b16 %v409
    %v1200 = vpack.c.b16 %v692, %v688
    %v1201 = vpack.c.b16 %v693, %v689
    %v1202 = vpack.c.b16 %v694, %v690
    %v1203 = vpack.c.b16 %v695, %v691
    %v1204 = vpack.c.b16 %v700, %v696
    %v1205 = vpack.c.b16 %v701, %v697
    %v1206 = vpack.c.b16 %v702, %v698
    %v1207 = vpack.c.b16 %v703, %v699
    %v1208 = vpack.c.b16 %v708, %v704
    %v1209 = vpack.c.b16 %v709, %v705
    %v1210 = vpack.c.b16 %v710, %v706
    %v1211 = vpack.c.b16 %v711, %v707
    %v1212 = vpack.c.b16 %v716, %v712
    %v1213 = vpack.c.b16 %v717, %v713
    %v1214 = vpack.c.b16 %v718, %v714
    %v1215 = vpack.c.b16 %v719, %v715
    %v1216 = vpack.c.b16 %v724, %v720
    %v1217 = vpack.c.b16 %v725, %v721
    %v1218 = vpack.c.b16 %v726, %v722
    %v1219 = vpack.c.b16 %v727, %v723
    %v1220 = vpack.c.b16 %v732, %v728
    %v1221 = vpack.c.b16 %v733, %v729
    %v1222 = vpack.c.b16 %v734, %v730
    %v1223 = vpack.c.b16 %v735, %v731
    %v1224 = vpack.c.b16 %v740, %v736
    %v1225 = vpack.c.b16 %v741, %v737
    %v1226 = vpack.c.b16 %v742, %v738
    %v1227 = vpack.c.b16 %v743, %v739
    %v1228 = vpack.c.b16 %v748, %v744
    %v1229 = vpack.c.b16 %v749, %v745
    %v1230 = vpack.c.b16 %v750, %v746
    %v1231 = vpack.c.b16 %v751, %v747
    %v1232 = vpack.c.b16 %v756, %v752
    %v1233 = vpack.c.b16 %v757, %v753
    %v1234 = vpack.c.b16 %v758, %v754
    %v1235 = vpack.c.b16 %v759, %v755
    %v1236 = vpack.c.b16 %v764, %v760
    %v1237 = vpack.c.b16 %v765, %v761
    %v1238 = vpack.c.b16 %v766, %v762
    %v1239 = vpack.c.b16 %v767, %v763
    %v1240 = vpack.c.b16 %v772, %v768
    %v1241 = vpack.c.b16 %v773, %v769
    %v1242 = vpack.c.b16 %v774, %v770
    %v1243 = vpack.c.b16 %v775, %v771
    %v1244 = vpack.c.b16 %v780, %v776
    %v1245 = vpack.c.b16 %v781, %v777
    %v1246 = vpack.c.b16 %v782, %v778
    %v1247 = vpack.c.b16 %v783, %v779
    %v1248 = vpack.c.b16 %v788, %v784
    %v1249 = vpack.c.b16 %v789, %v785
    %v1250 = vpack.c.b16 %v790, %v786
    %v1251 = vpack.c.b16 %v791, %v787
    %v1252 = vpack.c.b16 %v796, %v792
    %v1253 = vpack.c.b16 %v797, %v793
    %v1254 = vpack.c.b16 %v798, %v794
    %v1255 = vpack.c.b16 %v799, %v795
    %v1256 = vpack.c.b16 %v804, %v800
    %v1257 = vpack.c.b16 %v805, %v801
    %v1258 = vpack.c.b16 %v806, %v802
    %v1259 = vpack.c.b16 %v807, %v803
    %v1260 = vpack.c.b16 %v812, %v808
    %v1261 = vpack.c.b16 %v813, %v809
    %v1262 = vpack.c.b16 %v814, %v810
    %v1263 = vpack.c.b16 %v815, %v811
    %v1264 = vpack.c.b16 %v820, %v816
    %v1265 = vpack.c.b16 %v821, %v817
    %v1266 = vpack.c.b16 %v822, %v818
    %v1267 = vpack.c.b16 %v823, %v819
    %v1268 = vpack.c.b16 %v828, %v824
    %v1269 = vpack.c.b16 %v829, %v825
    %v1270 = vpack.c.b16 %v830, %v826
    %v1271 = vpack.c.b16 %v831, %v827
    %v1272 = vpack.c.b16 %v836, %v832
    %v1273 = vpack.c.b16 %v837, %v833
    %v1274 = vpack.c.b16 %v838, %v834
    %v1275 = vpack.c.b16 %v839, %v835
    %v1276 = vpack.c.b16 %v844, %v840
    %v1277 = vpack.c.b16 %v845, %v841
    %v1278 = vpack.c.b16 %v846, %v842
    %v1279 = vpack.c.b16 %v847, %v843
    %v1280 = vpack.c.b16 %v852, %v848
    %v1281 = vpack.c.b16 %v853, %v849
    %v1282 = vpack.c.b16 %v854, %v850
    %v1283 = vpack.c.b16 %v855, %v851
    %v1284 = vpack.c.b16 %v860, %v856
    %v1285 = vpack.c.b16 %v861, %v857
    %v1286 = vpack.c.b16 %v862, %v858
    %v1287 = vpack.c.b16 %v863, %v859
    %v1288 = vpack.c.b16 %v868, %v864
    %v1289 = vpack.c.b16 %v869, %v865
    %v1290 = vpack.c.b16 %v870, %v866
    %v1291 = vpack.c.b16 %v871, %v867
    %v1292 = vpack.c.b16 %v876, %v872
    %v1293 = vpack.c.b16 %v877, %v873
    %v1294 = vpack.c.b16 %v878, %v874
    %v1295 = vpack.c.b16 %v879, %v875
    %v1296 = vpack.c.b16 %v884, %v880
    %v1297 = vpack.c.b16 %v885, %v881
    %v1298 = vpack.c.b16 %v886, %v882
    %v1299 = vpack.c.b16 %v887, %v883
    %v1300 = vpack.c.b16 %v892, %v888
    %v1301 = vpack.c.b16 %v893, %v889
    %v1302 = vpack.c.b16 %v894, %v890
    %v1303 = vpack.c.b16 %v895, %v891
    %v1304 = vpack.c.b16 %v900, %v896
    %v1305 = vpack.c.b16 %v901, %v897
    %v1306 = vpack.c.b16 %v902, %v898
    %v1307 = vpack.c.b16 %v903, %v899
    %v1308 = vpack.c.b16 %v908, %v904
    %v1309 = vpack.c.b16 %v909, %v905
    %v1310 = vpack.c.b16 %v910, %v906
    %v1311 = vpack.c.b16 %v911, %v907
    %v1312 = vpack.c.b16 %v916, %v912
    %v1313 = vpack.c.b16 %v917, %v913
    %v1314 = vpack.c.b16 %v918, %v914
    %v1315 = vpack.c.b16 %v919, %v915
    %v1316 = vpack.c.b16 %v924, %v920
    %v1317 = vpack.c.b16 %v925, %v921
    %v1318 = vpack.c.b16 %v926, %v922
    %v1319 = vpack.c.b16 %v927, %v923
    %v1320 = vpack.c.b16 %v932, %v928
    %v1321 = vpack.c.b16 %v933, %v929
    %v1322 = vpack.c.b16 %v934, %v930
    %v1323 = vpack.c.b16 %v935, %v931
    %v1324 = vpack.c.b16 %v940, %v936
    %v1325 = vpack.c.b16 %v941, %v937
    %v1326 = vpack.c.b16 %v942, %v938
    %v1327 = vpack.c.b16 %v943, %v939
    %v1328 = vpack.c.b16 %v948, %v944
    %v1329 = vpack.c.b16 %v949, %v945
    %v1330 = vpack.c.b16 %v950, %v946
    %v1331 = vpack.c.b16 %v951, %v947
    %v1332 = vpack.c.b16 %v956, %v952
    %v1333 = vpack.c.b16 %v957, %v953
    %v1334 = vpack.c.b16 %v958, %v954
    %v1335 = vpack.c.b16 %v959, %v955
    %v1336 = vpack.c.b16 %v964, %v960
    %v1337 = vpack.c.b16 %v965, %v961
    %v1338 = vpack.c.b16 %v966, %v962
    %v1339 = vpack.c.b16 %v967, %v963
    %v1340 = vpack.c.b16 %v972, %v968
    %v1341 = vpack.c.b16 %v973, %v969
    %v1342 = vpack.c.b16 %v974, %v970
    %v1343 = vpack.c.b16 %v975, %v971
    %v1344 = vpack.c.b16 %v980, %v976
    %v1345 = vpack.c.b16 %v981, %v977
    %v1346 = vpack.c.b16 %v982, %v978
    %v1347 = vpack.c.b16 %v983, %v979
    %v1348 = vpack.c.b16 %v988, %v984
    %v1349 = vpack.c.b16 %v989, %v985
    %v1350 = vpack.c.b16 %v990, %v986
    %v1351 = vpack.c.b16 %v991, %v987
    %v1352 = vpack.c.b16 %v996, %v992
    %v1353 = vpack.c.b16 %v997, %v993
    %v1354 = vpack.c.b16 %v998, %v994
    %v1355 = vpack.c.b16 %v999, %v995
    %v1356 = vpack.c.b16 %v1004, %v1000
    %v1357 = vpack.c.b16 %v1005, %v1001
    %v1358 = vpack.c.b16 %v1006, %v1002
    %v1359 = vpack.c.b16 %v1007, %v1003
    %v1360 = vpack.c.b16 %v1012, %v1008
    %v1361 = vpack.c.b16 %v1013, %v1009
    %v1362 = vpack.c.b16 %v1014, %v1010
    %v1363 = vpack.c.b16 %v1015, %v1011
    %v1364 = vpack.c.b16 %v1020, %v1016
    %v1365 = vpack.c.b16 %v1021, %v1017
    %v1366 = vpack.c.b16 %v1022, %v1018
    %v1367 = vpack.c.b16 %v1023, %v1019
    %v1368 = vpack.c.b16 %v1028, %v1024
    %v1369 = vpack.c.b16 %v1029, %v1025
    %v1370 = vpack.c.b16 %v1030, %v1026
    %v1371 = vpack.c.b16 %v1031, %v1027
    %v1372 = vpack.c.b16 %v1036, %v1032
    %v1373 = vpack.c.b16 %v1037, %v1033
    %v1374 = vpack.c.b16 %v1038, %v1034
    %v1375 = vpack.c.b16 %v1039, %v1035
    %v1376 = vpack.c.b16 %v1044, %v1040
    %v1377 = vpack.c.b16 %v1045, %v1041
    %v1378 = vpack.c.b16 %v1046, %v1042
    %v1379 = vpack.c.b16 %v1047, %v1043
    %v1380 = vpack.c.b16 %v1052, %v1048
    %v1381 = vpack.c.b16 %v1053, %v1049
    %v1382 = vpack.c.b16 %v1054, %v1050
    %v1383 = vpack.c.b16 %v1055, %v1051
    %v1384 = vpack.c.b16 %v1060, %v1056
    %v1385 = vpack.c.b16 %v1061, %v1057
    %v1386 = vpack.c.b16 %v1062, %v1058
    %v1387 = vpack.c.b16 %v1063, %v1059
    %v1388 = vpack.c.b16 %v1068, %v1064
    %v1389 = vpack.c.b16 %v1069, %v1065
    %v1390 = vpack.c.b16 %v1070, %v1066
    %v1391 = vpack.c.b16 %v1071, %v1067
    %v1392 = vpack.c.b16 %v1076, %v1072
    %v1393 = vpack.c.b16 %v1077, %v1073
    %v1394 = vpack.c.b16 %v1078, %v1074
    %v1395 = vpack.c.b16 %v1079, %v1075
    %v1396 = vpack.c.b16 %v1084, %v1080
    %v1397 = vpack.c.b16 %v1085, %v1081
    %v1398 = vpack.c.b16 %v1086, %v1082
    %v1399 = vpack.c.b16 %v1087, %v1083
    %v1400 = vpack.c.b16 %v1092, %v1088
    %v1401 = vpack.c.b16 %v1093, %v1089
    %v1402 = vpack.c.b16 %v1094, %v1090
    %v1403 = vpack.c.b16 %v1095, %v1091
    %v1404 = vpack.c.b16 %v1100, %v1096
    %v1405 = vpack.c.b16 %v1101, %v1097
    %v1406 = vpack.c.b16 %v1102, %v1098
    %v1407 = vpack.c.b16 %v1103, %v1099
    %v1408 = vpack.c.b16 %v1108, %v1104
    %v1409 = vpack.c.b16 %v1109, %v1105
    %v1410 = vpack.c.b16 %v1110, %v1106
    %v1411 = vpack.c.b16 %v1111, %v1107
    %v1412 = vpack.c.b16 %v1116, %v1112
    %v1413 = vpack.c.b16 %v1117, %v1113
    %v1414 = vpack.c.b16 %v1118, %v1114
    %v1415 = vpack.c.b16 %v1119, %v1115
    %v1416 = vpack.c.b16 %v1124, %v1120
    %v1417 = vpack.c.b16 %v1125, %v1121
    %v1418 = vpack.c.b16 %v1126, %v1122
    %v1419 = vpack.c.b16 %v1127, %v1123
    %v1420 = vpack.c.b16 %v1132, %v1128
    %v1421 = vpack.c.b16 %v1133, %v1129
    %v1422 = vpack.c.b16 %v1134, %v1130
    %v1423 = vpack.c.b16 %v1135, %v1131
    %v1424 = vpack.c.b16 %v1140, %v1136
    %v1425 = vpack.c.b16 %v1141, %v1137
    %v1426 = vpack.c.b16 %v1142, %v1138
    %v1427 = vpack.c.b16 %v1143, %v1139
    %v1428 = vpack.c.b16 %v1148, %v1144
    %v1429 = vpack.c.b16 %v1149, %v1145
    %v1430 = vpack.c.b16 %v1150, %v1146
    %v1431 = vpack.c.b16 %v1151, %v1147
    %v1432 = vpack.c.b16 %v1156, %v1152
    %v1433 = vpack.c.b16 %v1157, %v1153
    %v1434 = vpack.c.b16 %v1158, %v1154
    %v1435 = vpack.c.b16 %v1159, %v1155
    %v1436 = vpack.c.b16 %v1164, %v1160
    %v1437 = vpack.c.b16 %v1165, %v1161
    %v1438 = vpack.c.b16 %v1166, %v1162
    %v1439 = vpack.c.b16 %v1167, %v1163
    %v1440 = vpack.c.b16 %v1172, %v1168
    %v1441 = vpack.c.b16 %v1173, %v1169
    %v1442 = vpack.c.b16 %v1174, %v1170
    %v1443 = vpack.c.b16 %v1175, %v1171
    %v1444 = vpack.c.b16 %v1180, %v1176
    %v1445 = vpack.c.b16 %v1181, %v1177
    %v1446 = vpack.c.b16 %v1182, %v1178
    %v1447 = vpack.c.b16 %v1183, %v1179
    %v1448 = vpack.c.b16 %v1188, %v1184
    %v1449 = vpack.c.b16 %v1189, %v1185
    %v1450 = vpack.c.b16 %v1190, %v1186
    %v1451 = vpack.c.b16 %v1191, %v1187
    %v1452 = vpack.c.b16 %v1196, %v1192
    %v1453 = vpack.c.b16 %v1197, %v1193
    %v1454 = vpack.c.b16 %v1198, %v1194
    %v1455 = vpack.c.b16 %v1199, %v1195
    %1712 = vmatprep.subr.bf16.mxu0 %v1201
    %1713 = vmatpush1.bf16.msra.mxu0 %v1200
    %1714 = vmatprep.subr.bf16.mxu0 %v1205
    %1715 = vmatpush1.bf16.msra.mxu0 %v1204
    %1716 = vmatprep.subr.bf16.mxu0 %v1209
    %1717 = vmatpush1.bf16.msra.mxu0 %v1208
    %1718 = vmatprep.subr.bf16.mxu0 %v1213
    %1719 = vmatpush1.bf16.msra.mxu0 %v1212
    %1720 = vmatprep.subr.bf16.mxu0 %v1217
    %1721 = vmatpush1.bf16.msra.mxu0 %v1216
    %1722 = vmatprep.subr.bf16.mxu0 %v1221
    %1723 = vmatpush1.bf16.msra.mxu0 %v1220
    %1724 = vmatprep.subr.bf16.mxu0 %v1225
    %1725 = vmatpush1.bf16.msra.mxu0 %v1224
    %1726 = vmatprep.subr.bf16.mxu0 %v1229
    %1727 = vmatpush1.bf16.msra.mxu0 %v1228
    %1728 = vmatprep.subr.bf16.mxu0 %v1233
    %1729 = vmatpush1.bf16.msra.mxu0 %v1232
    %1730 = vmatprep.subr.bf16.mxu0 %v1237
    %1731 = vmatpush1.bf16.msra.mxu0 %v1236
    %1732 = vmatprep.subr.bf16.mxu0 %v1241
    %1733 = vmatpush1.bf16.msra.mxu0 %v1240
    %1734 = vmatprep.subr.bf16.mxu0 %v1245
    %1735 = vmatpush1.bf16.msra.mxu0 %v1244
    %1736 = vmatprep.subr.bf16.mxu0 %v1249
    %1737 = vmatpush1.bf16.msra.mxu0 %v1248
    %1738 = vmatprep.subr.bf16.mxu0 %v1253
    %1739 = vmatpush1.bf16.msra.mxu0 %v1252
    %1740 = vmatprep.subr.bf16.mxu0 %v1257
    %1741 = vmatpush1.bf16.msra.mxu0 %v1256
    %1742 = vmatprep.subr.bf16.mxu0 %v1261
    %1743 = vmatpush1.bf16.msra.mxu0 %v1260
    %1744 = vmatprep.mubr.bf16.mxu0 %v147
    %1745 = vmatmul.mubr.bf16.gmra.mrb[0].mxu0 %v146
    %v1746 = vpop.f32.mrb[0].mxu0
    %v1747 = vadd.f32 %v415, %v1746
    %v1748 = vpop.f32.mrb[0].mxu0
    %v1749 = vadd.f32 %v419, %v1748
    %v1750 = vpop.f32.mrb[0].mxu0
    %v1751 = vpop.f32.mrb[0].mxu0
    %1752 = vdwg.mxu0
    %1753 = vmatprep.subr.bf16.mxu0 %v1265
    %1754 = vmatpush1.bf16.msra.mxu0 %v1264
    %1755 = vmatprep.subr.bf16.mxu0 %v1269
    %1756 = vmatpush1.bf16.msra.mxu0 %v1268
    %1757 = vmatprep.subr.bf16.mxu0 %v1273
    %1758 = vmatpush1.bf16.msra.mxu0 %v1272
    %1759 = vmatprep.subr.bf16.mxu0 %v1277
    %1760 = vmatpush1.bf16.msra.mxu0 %v1276
    %1761 = vmatprep.subr.bf16.mxu0 %v1281
    %1762 = vmatpush1.bf16.msra.mxu0 %v1280
    %1763 = vmatprep.subr.bf16.mxu0 %v1285
    %1764 = vmatpush1.bf16.msra.mxu0 %v1284
    %1765 = vmatprep.subr.bf16.mxu0 %v1289
    %1766 = vmatpush1.bf16.msra.mxu0 %v1288
    %1767 = vmatprep.subr.bf16.mxu0 %v1293
    %1768 = vmatpush1.bf16.msra.mxu0 %v1292
    %1769 = vmatprep.subr.bf16.mxu0 %v1297
    %1770 = vmatpush1.bf16.msra.mxu0 %v1296
    %1771 = vmatprep.subr.bf16.mxu0 %v1301
    %1772 = vmatpush1.bf16.msra.mxu0 %v1300
    %1773 = vmatprep.subr.bf16.mxu0 %v1305
    %1774 = vmatpush1.bf16.msra.mxu0 %v1304
    %1775 = vmatprep.subr.bf16.mxu0 %v1309
    %1776 = vmatpush1.bf16.msra.mxu0 %v1308
    %1777 = vmatprep.subr.bf16.mxu0 %v1313
    %1778 = vmatpush1.bf16.msra.mxu0 %v1312
    %1779 = vmatprep.subr.bf16.mxu0 %v1317
    %1780 = vmatpush1.bf16.msra.mxu0 %v1316
    %1781 = vmatprep.subr.bf16.mxu0 %v1321
    %1782 = vmatpush1.bf16.msra.mxu0 %v1320
    %1783 = vmatprep.subr.bf16.mxu0 %v1325
    %1784 = vmatpush1.bf16.msra.mxu0 %v1324
    %1785 = vmatprep.mubr.bf16.mxu0 %v149
    %1786 = vmatmul.mubr.bf16.gmra.mrb[0].mxu0 %v148
    %v1787 = vpop.f32.mrb[0].mxu0
    %v1788 = vadd.f32 %v1747, %v1787
    %v1789 = vpop.f32.mrb[0].mxu0
    %v1790 = vadd.f32 %v1749, %v1789
    %v1791 = vpop.f32.mrb[0].mxu0
    %v1792 = vpop.f32.mrb[0].mxu0
    %1793 = vdwg.mxu0
    %1794 = vmatprep.subr.bf16.mxu0 %v1329
    %1795 = vmatpush1.bf16.msra.mxu0 %v1328
    %1796 = vmatprep.subr.bf16.mxu0 %v1333
    %1797 = vmatpush1.bf16.msra.mxu0 %v1332
    %1798 = vmatprep.subr.bf16.mxu0 %v1337
    %1799 = vmatpush1.bf16.msra.mxu0 %v1336
    %1800 = vmatprep.subr.bf16.mxu0 %v1341
    %1801 = vmatpush1.bf16.msra.mxu0 %v1340
    %1802 = vmatprep.subr.bf16.mxu0 %v1345
    %1803 = vmatpush1.bf16.msra.mxu0 %v1344
    %1804 = vmatprep.subr.bf16.mxu0 %v1349
    %1805 = vmatpush1.bf16.msra.mxu0 %v1348
    %1806 = vmatprep.subr.bf16.mxu0 %v1353
    %1807 = vmatpush1.bf16.msra.mxu0 %v1352
    %1808 = vmatprep.subr.bf16.mxu0 %v1357
    %1809 = vmatpush1.bf16.msra.mxu0 %v1356
    %1810 = vmatprep.subr.bf16.mxu0 %v1361
    %1811 = vmatpush1.bf16.msra.mxu0 %v1360
    %1812 = vmatprep.subr.bf16.mxu0 %v1365
    %1813 = vmatpush1.bf16.msra.mxu0 %v1364
    %1814 = vmatprep.subr.bf16.mxu0 %v1369
    %1815 = vmatpush1.bf16.msra.mxu0 %v1368
    %1816 = vmatprep.subr.bf16.mxu0 %v1373
    %1817 = vmatpush1.bf16.msra.mxu0 %v1372
    %1818 = vmatprep.subr.bf16.mxu0 %v1377
    %1819 = vmatpush1.bf16.msra.mxu0 %v1376
    %1820 = vmatprep.subr.bf16.mxu0 %v1381
    %1821 = vmatpush1.bf16.msra.mxu0 %v1380
    %1822 = vmatprep.subr.bf16.mxu0 %v1385
    %1823 = vmatpush1.bf16.msra.mxu0 %v1384
    %1824 = vmatprep.subr.bf16.mxu0 %v1389
    %1825 = vmatpush1.bf16.msra.mxu0 %v1388
    %1826 = vmatprep.mubr.bf16.mxu0 %v151
    %1827 = vmatmul.mubr.bf16.gmra.mrb[0].mxu0 %v150
    %v1828 = vpop.f32.mrb[0].mxu0
    %v1829 = vadd.f32 %v1788, %v1828
    %v1830 = vpop.f32.mrb[0].mxu0
    %v1831 = vadd.f32 %v1790, %v1830
    %v1832 = vpop.f32.mrb[0].mxu0
    %v1833 = vpop.f32.mrb[0].mxu0
    %1834 = vdwg.mxu0
    %1835 = vmatprep.subr.bf16.mxu0 %v1393
    %1836 = vmatpush1.bf16.msra.mxu0 %v1392
    %1837 = vmatprep.subr.bf16.mxu0 %v1397
    %1838 = vmatpush1.bf16.msra.mxu0 %v1396
    %1839 = vmatprep.subr.bf16.mxu0 %v1401
    %1840 = vmatpush1.bf16.msra.mxu0 %v1400
    %1841 = vmatprep.subr.bf16.mxu0 %v1405
    %1842 = vmatpush1.bf16.msra.mxu0 %v1404
    %1843 = vmatprep.subr.bf16.mxu0 %v1409
    %1844 = vmatpush1.bf16.msra.mxu0 %v1408
    %1845 = vmatprep.subr.bf16.mxu0 %v1413
    %1846 = vmatpush1.bf16.msra.mxu0 %v1412
    %1847 = vmatprep.subr.bf16.mxu0 %v1417
    %1848 = vmatpush1.bf16.msra.mxu0 %v1416
    %1849 = vmatprep.subr.bf16.mxu0 %v1421
    %1850 = vmatpush1.bf16.msra.mxu0 %v1420
    %1851 = vmatprep.subr.bf16.mxu0 %v1425
    %1852 = vmatpush1.bf16.msra.mxu0 %v1424
    %1853 = vmatprep.subr.bf16.mxu0 %v1429
    %1854 = vmatpush1.bf16.msra.mxu0 %v1428
    %1855 = vmatprep.subr.bf16.mxu0 %v1433
    %1856 = vmatpush1.bf16.msra.mxu0 %v1432
    %1857 = vmatprep.subr.bf16.mxu0 %v1437
    %1858 = vmatpush1.bf16.msra.mxu0 %v1436
    %1859 = vmatprep.subr.bf16.mxu0 %v1441
    %1860 = vmatpush1.bf16.msra.mxu0 %v1440
    %1861 = vmatprep.subr.bf16.mxu0 %v1445
    %1862 = vmatpush1.bf16.msra.mxu0 %v1444
    %1863 = vmatprep.subr.bf16.mxu0 %v1449
    %1864 = vmatpush1.bf16.msra.mxu0 %v1448
    %1865 = vmatprep.subr.bf16.mxu0 %v1453
    %1866 = vmatpush1.bf16.msra.mxu0 %v1452
    %1867 = vmatprep.mubr.bf16.mxu0 %v153
    %1868 = vmatmul.mubr.bf16.gmra.mrb[0].mxu0 %v152
    %v1869 = vpop.f32.mrb[0].mxu0
    %v1870 = vadd.f32 %v1829, %v1869
    %v1871 = vpop.f32.mrb[0].mxu0
    %v1872 = vadd.f32 %v1831, %v1871
    %v1873 = vpop.f32.mrb[0].mxu0
    %v1874 = vpop.f32.mrb[0].mxu0
    %1875 = vdwg.mxu0
    %1876 = vmatprep.subr.bf16.mxu0 %v1203
    %1877 = vmatpush1.bf16.msra.mxu0 %v1202
    %1878 = vmatprep.subr.bf16.mxu0 %v1207
    %1879 = vmatpush1.bf16.msra.mxu0 %v1206
    %1880 = vmatprep.subr.bf16.mxu0 %v1211
    %1881 = vmatpush1.bf16.msra.mxu0 %v1210
    %1882 = vmatprep.subr.bf16.mxu0 %v1215
    %1883 = vmatpush1.bf16.msra.mxu0 %v1214
    %1884 = vmatprep.subr.bf16.mxu0 %v1219
    %1885 = vmatpush1.bf16.msra.mxu0 %v1218
    %1886 = vmatprep.subr.bf16.mxu0 %v1223
    %1887 = vmatpush1.bf16.msra.mxu0 %v1222
    %1888 = vmatprep.subr.bf16.mxu0 %v1227
    %1889 = vmatpush1.bf16.msra.mxu0 %v1226
    %1890 = vmatprep.subr.bf16.mxu0 %v1231
    %1891 = vmatpush1.bf16.msra.mxu0 %v1230
    %1892 = vmatprep.subr.bf16.mxu0 %v1235
    %1893 = vmatpush1.bf16.msra.mxu0 %v1234
    %1894 = vmatprep.subr.bf16.mxu0 %v1239
    %1895 = vmatpush1.bf16.msra.mxu0 %v1238
    %1896 = vmatprep.subr.bf16.mxu0 %v1243
    %1897 = vmatpush1.bf16.msra.mxu0 %v1242
    %1898 = vmatprep.subr.bf16.mxu0 %v1247
    %1899 = vmatpush1.bf16.msra.mxu0 %v1246
    %1900 = vmatprep.subr.bf16.mxu0 %v1251
    %1901 = vmatpush1.bf16.msra.mxu0 %v1250
    %1902 = vmatprep.subr.bf16.mxu0 %v1255
    %1903 = vmatpush1.bf16.msra.mxu0 %v1254
    %1904 = vmatprep.subr.bf16.mxu0 %v1259
    %1905 = vmatpush1.bf16.msra.mxu0 %v1258
    %1906 = vmatprep.subr.bf16.mxu0 %v1263
    %1907 = vmatpush1.bf16.msra.mxu0 %v1262
    %1908 = vmatprep.mubr.bf16.mxu0 %v147
    %1909 = vmatmul.mubr.bf16.gmra.mrb[0].mxu0 %v146
    %v1910 = vpop.f32.mrb[0].mxu0
    %v1911 = vadd.f32 %v423, %v1910
    %v1912 = vpop.f32.mrb[0].mxu0
    %v1913 = vadd.f32 %v427, %v1912
    %v1914 = vpop.f32.mrb[0].mxu0
    %v1915 = vpop.f32.mrb[0].mxu0
    %1916 = vdwg.mxu0
    %1917 = vmatprep.subr.bf16.mxu0 %v1267
    %1918 = vmatpush1.bf16.msra.mxu0 %v1266
    %1919 = vmatprep.subr.bf16.mxu0 %v1271
    %1920 = vmatpush1.bf16.msra.mxu0 %v1270
    %1921 = vmatprep.subr.bf16.mxu0 %v1275
    %1922 = vmatpush1.bf16.msra.mxu0 %v1274
    %1923 = vmatprep.subr.bf16.mxu0 %v1279
    %1924 = vmatpush1.bf16.msra.mxu0 %v1278
    %1925 = vmatprep.subr.bf16.mxu0 %v1283
    %1926 = vmatpush1.bf16.msra.mxu0 %v1282
    %1927 = vmatprep.subr.bf16.mxu0 %v1287
    %1928 = vmatpush1.bf16.msra.mxu0 %v1286
    %1929 = vmatprep.subr.bf16.mxu0 %v1291
    %1930 = vmatpush1.bf16.msra.mxu0 %v1290
    %1931 = vmatprep.subr.bf16.mxu0 %v1295
    %1932 = vmatpush1.bf16.msra.mxu0 %v1294
    %1933 = vmatprep.subr.bf16.mxu0 %v1299
    %1934 = vmatpush1.bf16.msra.mxu0 %v1298
    %1935 = vmatprep.subr.bf16.mxu0 %v1303
    %1936 = vmatpush1.bf16.msra.mxu0 %v1302
    %1937 = vmatprep.subr.bf16.mxu0 %v1307
    %1938 = vmatpush1.bf16.msra.mxu0 %v1306
    %1939 = vmatprep.subr.bf16.mxu0 %v1311
    %1940 = vmatpush1.bf16.msra.mxu0 %v1310
    %1941 = vmatprep.subr.bf16.mxu0 %v1315
    %1942 = vmatpush1.bf16.msra.mxu0 %v1314
    %1943 = vmatprep.subr.bf16.mxu0 %v1319
    %1944 = vmatpush1.bf16.msra.mxu0 %v1318
    %1945 = vmatprep.subr.bf16.mxu0 %v1323
    %1946 = vmatpush1.bf16.msra.mxu0 %v1322
    %1947 = vmatprep.subr.bf16.mxu0 %v1327
    %1948 = vmatpush1.bf16.msra.mxu0 %v1326
    %1949 = vmatprep.mubr.bf16.mxu0 %v149
    %1950 = vmatmul.mubr.bf16.gmra.mrb[0].mxu0 %v148
    %v1951 = vpop.f32.mrb[0].mxu0
    %v1952 = vadd.f32 %v1911, %v1951
    %v1953 = vpop.f32.mrb[0].mxu0
    %v1954 = vadd.f32 %v1913, %v1953
    %v1955 = vpop.f32.mrb[0].mxu0
    %v1956 = vpop.f32.mrb[0].mxu0
    %1957 = vdwg.mxu0
    %1958 = vmatprep.subr.bf16.mxu0 %v1331
    %1959 = vmatpush1.bf16.msra.mxu0 %v1330
    %1960 = vmatprep.subr.bf16.mxu0 %v1335
    %1961 = vmatpush1.bf16.msra.mxu0 %v1334
    %1962 = vmatprep.subr.bf16.mxu0 %v1339
    %1963 = vmatpush1.bf16.msra.mxu0 %v1338
    %1964 = vmatprep.subr.bf16.mxu0 %v1343
    %1965 = vmatpush1.bf16.msra.mxu0 %v1342
    %1966 = vmatprep.subr.bf16.mxu0 %v1347
    %1967 = vmatpush1.bf16.msra.mxu0 %v1346
    %1968 = vmatprep.subr.bf16.mxu0 %v1351
    %1969 = vmatpush1.bf16.msra.mxu0 %v1350
    %1970 = vmatprep.subr.bf16.mxu0 %v1355
    %1971 = vmatpush1.bf16.msra.mxu0 %v1354
    %1972 = vmatprep.subr.bf16.mxu0 %v1359
    %1973 = vmatpush1.bf16.msra.mxu0 %v1358
    %1974 = vmatprep.subr.bf16.mxu0 %v1363
    %1975 = vmatpush1.bf16.msra.mxu0 %v1362
    %1976 = vmatprep.subr.bf16.mxu0 %v1367
    %1977 = vmatpush1.bf16.msra.mxu0 %v1366
    %1978 = vmatprep.subr.bf16.mxu0 %v1371
    %1979 = vmatpush1.bf16.msra.mxu0 %v1370
    %1980 = vmatprep.subr.bf16.mxu0 %v1375
    %1981 = vmatpush1.bf16.msra.mxu0 %v1374
    %1982 = vmatprep.subr.bf16.mxu0 %v1379
    %1983 = vmatpush1.bf16.msra.mxu0 %v1378
    %1984 = vmatprep.subr.bf16.mxu0 %v1383
    %1985 = vmatpush1.bf16.msra.mxu0 %v1382
    %1986 = vmatprep.subr.bf16.mxu0 %v1387
    %1987 = vmatpush1.bf16.msra.mxu0 %v1386
    %1988 = vmatprep.subr.bf16.mxu0 %v1391
    %1989 = vmatpush1.bf16.msra.mxu0 %v1390
    %1990 = vmatprep.mubr.bf16.mxu0 %v151
    %1991 = vmatmul.mubr.bf16.gmra.mrb[0].mxu0 %v150
    %v1992 = vpop.f32.mrb[0].mxu0
    %v1993 = vadd.f32 %v1952, %v1992
    %v1994 = vpop.f32.mrb[0].mxu0
    %v1995 = vadd.f32 %v1954, %v1994
    %v1996 = vpop.f32.mrb[0].mxu0
    %v1997 = vpop.f32.mrb[0].mxu0
    %1998 = vdwg.mxu0
    %1999 = vmatprep.subr.bf16.mxu0 %v1395
    %2000 = vmatpush1.bf16.msra.mxu0 %v1394
    %2001 = vmatprep.subr.bf16.mxu0 %v1399
    %2002 = vmatpush1.bf16.msra.mxu0 %v1398
    %2003 = vmatprep.subr.bf16.mxu0 %v1403
    %2004 = vmatpush1.bf16.msra.mxu0 %v1402
    %2005 = vmatprep.subr.bf16.mxu0 %v1407
    %2006 = vmatpush1.bf16.msra.mxu0 %v1406
    %2007 = vmatprep.subr.bf16.mxu0 %v1411
    %2008 = vmatpush1.bf16.msra.mxu0 %v1410
    %2009 = vmatprep.subr.bf16.mxu0 %v1415
    %2010 = vmatpush1.bf16.msra.mxu0 %v1414
    %2011 = vmatprep.subr.bf16.mxu0 %v1419
    %2012 = vmatpush1.bf16.msra.mxu0 %v1418
    %2013 = vmatprep.subr.bf16.mxu0 %v1423
    %2014 = vmatpush1.bf16.msra.mxu0 %v1422
    %2015 = vmatprep.subr.bf16.mxu0 %v1427
    %2016 = vmatpush1.bf16.msra.mxu0 %v1426
    %2017 = vmatprep.subr.bf16.mxu0 %v1431
    %2018 = vmatpush1.bf16.msra.mxu0 %v1430
    %2019 = vmatprep.subr.bf16.mxu0 %v1435
    %2020 = vmatpush1.bf16.msra.mxu0 %v1434
    %2021 = vmatprep.subr.bf16.mxu0 %v1439
    %2022 = vmatpush1.bf16.msra.mxu0 %v1438
    %2023 = vmatprep.subr.bf16.mxu0 %v1443
    %2024 = vmatpush1.bf16.msra.mxu0 %v1442
    %2025 = vmatprep.subr.bf16.mxu0 %v1447
    %2026 = vmatpush1.bf16.msra.mxu0 %v1446
    %2027 = vmatprep.subr.bf16.mxu0 %v1451
    %2028 = vmatpush1.bf16.msra.mxu0 %v1450
    %2029 = vmatprep.subr.bf16.mxu0 %v1455
    %2030 = vmatpush1.bf16.msra.mxu0 %v1454
    %2031 = vmatprep.mubr.bf16.mxu0 %v153
    %2032 = vmatmul.mubr.bf16.gmra.mrb[0].mxu0 %v152
    %v2033 = vpop.f32.mrb[0].mxu0
    %v2034 = vadd.f32 %v1993, %v2033
    %v2035 = vpop.f32.mrb[0].mxu0
    %v2036 = vadd.f32 %v1995, %v2035
    %v2037 = vpop.f32.mrb[0].mxu0
    %v2038 = vpop.f32.mrb[0].mxu0
    %2039 = vdwg.mxu0
    %v2040 = vmax.f32 %v1870, 0.0
    %v2041 = vmax.f32 %v1872, 0.0
    %v2042 = vmax.f32 %v2034, 0.0
    %v2043 = vmax.f32 %v2036, 0.0
    %v2044 = vpack.c.bf16 %v2040, %v2040
    %v2045 = vpack.c.bf16 %v2041, %v2041
    %v2046 = vpack.c.bf16 %v2042, %v2042
    %v2047 = vpack.c.bf16 %v2043, %v2043
    %v2048 = vld [vmem:[#allocation7] sm:$0xff]
    %v2049 = vld [vmem:[#allocation7 + $0x8] sm:$0xff]
    %v2050 = vld [vmem:[#allocation7 + $0x10] sm:$0xff]
    %v2051 = vld [vmem:[#allocation7 + $0x18] sm:$0xff]
    %v2052 = vld [vmem:[#allocation7 + $0x20] sm:$0xff]
    %v2053 = vld [vmem:[#allocation7 + $0x28] sm:$0xff]
    %v2054 = vld [vmem:[#allocation7 + $0x30] sm:$0xff]
    %v2055 = vld [vmem:[#allocation7 + $0x38] sm:$0xff]
    %v2056 = vld [vmem:[#allocation7 + $0x40] sm:$0xff]
    %v2057 = vld [vmem:[#allocation7 + $0x48] sm:$0xff]
    %v2058 = vld [vmem:[#allocation7 + $0x50] sm:$0xff]
    %v2059 = vld [vmem:[#allocation7 + $0x58] sm:$0xff]
    %v2060 = vld [vmem:[#allocation7 + $0x60] sm:$0xff]
    %v2061 = vld [vmem:[#allocation7 + $0x68] sm:$0xff]
    %v2062 = vld [vmem:[#allocation7 + $0x70] sm:$0xff]
    %v2063 = vld [vmem:[#allocation7 + $0x78] sm:$0xff]
    %v2064 = vld [vmem:[#allocation7 + $0x80] sm:$0xff]
    %v2065 = vld [vmem:[#allocation7 + $0x88] sm:$0xff]
    %v2066 = vld [vmem:[#allocation7 + $0x90] sm:$0xff]
    %v2067 = vld [vmem:[#allocation7 + $0x98] sm:$0xff]
    %v2068 = vld [vmem:[#allocation7 + $0xa0] sm:$0xff]
    %v2069 = vld [vmem:[#allocation7 + $0xa8] sm:$0xff]
    %v2070 = vld [vmem:[#allocation7 + $0xb0] sm:$0xff]
    %v2071 = vld [vmem:[#allocation7 + $0xb8] sm:$0xff]
    %v2072 = vld [vmem:[#allocation7 + $0xc0] sm:$0xff]
    %v2073 = vld [vmem:[#allocation7 + $0xc8] sm:$0xff]
    %v2074 = vld [vmem:[#allocation7 + $0xd0] sm:$0xff]
    %v2075 = vld [vmem:[#allocation7 + $0xd8] sm:$0xff]
    %v2076 = vld [vmem:[#allocation7 + $0xe0] sm:$0xff]
    %v2077 = vld [vmem:[#allocation7 + $0xe8] sm:$0xff]
    %v2078 = vld [vmem:[#allocation7 + $0xf0] sm:$0xff]
    %v2079 = vld [vmem:[#allocation7 + $0xf8] sm:$0xff]
    %v2080 = vld [vmem:[#allocation7 + $0x100] sm:$0xff]
    %v2081 = vld [vmem:[#allocation7 + $0x108] sm:$0xff]
    %v2082 = vld [vmem:[#allocation7 + $0x110] sm:$0xff]
    %v2083 = vld [vmem:[#allocation7 + $0x118] sm:$0xff]
    %v2084 = vld [vmem:[#allocation7 + $0x120] sm:$0xff]
    %v2085 = vld [vmem:[#allocation7 + $0x128] sm:$0xff]
    %v2086 = vld [vmem:[#allocation7 + $0x130] sm:$0xff]
    %v2087 = vld [vmem:[#allocation7 + $0x138] sm:$0xff]
    %v2088 = vld [vmem:[#allocation7 + $0x140] sm:$0xff]
    %v2089 = vld [vmem:[#allocation7 + $0x148] sm:$0xff]
    %v2090 = vld [vmem:[#allocation7 + $0x150] sm:$0xff]
    %v2091 = vld [vmem:[#allocation7 + $0x158] sm:$0xff]
    %v2092 = vld [vmem:[#allocation7 + $0x160] sm:$0xff]
    %v2093 = vld [vmem:[#allocation7 + $0x168] sm:$0xff]
    %v2094 = vld [vmem:[#allocation7 + $0x170] sm:$0xff]
    %v2095 = vld [vmem:[#allocation7 + $0x178] sm:$0xff]
    %v2096 = vld [vmem:[#allocation7 + $0x180] sm:$0xff]
    %v2097 = vld [vmem:[#allocation7 + $0x188] sm:$0xff]
    %v2098 = vld [vmem:[#allocation7 + $0x190] sm:$0xff]
    %v2099 = vld [vmem:[#allocation7 + $0x198] sm:$0xff]
    %v2100 = vld [vmem:[#allocation7 + $0x1a0] sm:$0xff]
    %v2101 = vld [vmem:[#allocation7 + $0x1a8] sm:$0xff]
    %v2102 = vld [vmem:[#allocation7 + $0x1b0] sm:$0xff]
    %v2103 = vld [vmem:[#allocation7 + $0x1b8] sm:$0xff]
    %v2104 = vld [vmem:[#allocation7 + $0x1c0] sm:$0xff]
    %v2105 = vld [vmem:[#allocation7 + $0x1c8] sm:$0xff]
    %v2106 = vld [vmem:[#allocation7 + $0x1d0] sm:$0xff]
    %v2107 = vld [vmem:[#allocation7 + $0x1d8] sm:$0xff]
    %v2108 = vld [vmem:[#allocation7 + $0x1e0] sm:$0xff]
    %v2109 = vld [vmem:[#allocation7 + $0x1e8] sm:$0xff]
    %v2110 = vld [vmem:[#allocation7 + $0x1f0] sm:$0xff]
    %v2111 = vld [vmem:[#allocation7 + $0x1f8] sm:$0xff]
    %v2112 = vld [vmem:[%s4] sm:$0x3]
    %v2114 = vlaneseq
    %v2115 = vshrl.u32 %v2114, 7
    %v2116 = vsub.s32 0, %v2115
    %v2117 = vrot.slane %v2112, %v2116
    %v2118 = vlaneseq
    %v2119 = vshrl.u32 %v2118, 7
    %v2120 = vsub.s32 1, %v2119
    %v2121 = vrot.slane %v2112, %v2120
    %v2188 = vunpack.c.l.b16 %v2048
    %v2189 = vunpack.c.h.b16 %v2048
    %v2190 = vunpack.c.l.b16 %v2049
    %v2191 = vunpack.c.h.b16 %v2049
    %v2192 = vunpack.c.l.b16 %v2050
    %v2193 = vunpack.c.h.b16 %v2050
    %v2194 = vunpack.c.l.b16 %v2051
    %v2195 = vunpack.c.h.b16 %v2051
    %v2196 = vunpack.c.l.b16 %v2052
    %v2197 = vunpack.c.h.b16 %v2052
    %v2198 = vunpack.c.l.b16 %v2053
    %v2199 = vunpack.c.h.b16 %v2053
    %v2200 = vunpack.c.l.b16 %v2054
    %v2201 = vunpack.c.h.b16 %v2054
    %v2202 = vunpack.c.l.b16 %v2055
    %v2203 = vunpack.c.h.b16 %v2055
    %v2204 = vunpack.c.l.b16 %v2056
    %v2205 = vunpack.c.h.b16 %v2056
    %v2206 = vunpack.c.l.b16 %v2057
    %v2207 = vunpack.c.h.b16 %v2057
    %v2208 = vunpack.c.l.b16 %v2058
    %v2209 = vunpack.c.h.b16 %v2058
    %v2210 = vunpack.c.l.b16 %v2059
    %v2211 = vunpack.c.h.b16 %v2059
    %v2212 = vunpack.c.l.b16 %v2060
    %v2213 = vunpack.c.h.b16 %v2060
    %v2214 = vunpack.c.l.b16 %v2061
    %v2215 = vunpack.c.h.b16 %v2061
    %v2216 = vunpack.c.l.b16 %v2062
    %v2217 = vunpack.c.h.b16 %v2062
    %v2218 = vunpack.c.l.b16 %v2063
    %v2219 = vunpack.c.h.b16 %v2063
    %v2220 = vunpack.c.l.b16 %v2064
    %v2221 = vunpack.c.h.b16 %v2064
    %v2222 = vunpack.c.l.b16 %v2065
    %v2223 = vunpack.c.h.b16 %v2065
    %v2224 = vunpack.c.l.b16 %v2066
    %v2225 = vunpack.c.h.b16 %v2066
    %v2226 = vunpack.c.l.b16 %v2067
    %v2227 = vunpack.c.h.b16 %v2067
    %v2228 = vunpack.c.l.b16 %v2068
    %v2229 = vunpack.c.h.b16 %v2068
    %v2230 = vunpack.c.l.b16 %v2069
    %v2231 = vunpack.c.h.b16 %v2069
    %v2232 = vunpack.c.l.b16 %v2070
    %v2233 = vunpack.c.h.b16 %v2070
    %v2234 = vunpack.c.l.b16 %v2071
    %v2235 = vunpack.c.h.b16 %v2071
    %v2236 = vunpack.c.l.b16 %v2072
    %v2237 = vunpack.c.h.b16 %v2072
    %v2238 = vunpack.c.l.b16 %v2073
    %v2239 = vunpack.c.h.b16 %v2073
    %v2240 = vunpack.c.l.b16 %v2074
    %v2241 = vunpack.c.h.b16 %v2074
    %v2242 = vunpack.c.l.b16 %v2075
    %v2243 = vunpack.c.h.b16 %v2075
    %v2244 = vunpack.c.l.b16 %v2076
    %v2245 = vunpack.c.h.b16 %v2076
    %v2246 = vunpack.c.l.b16 %v2077
    %v2247 = vunpack.c.h.b16 %v2077
    %v2248 = vunpack.c.l.b16 %v2078
    %v2249 = vunpack.c.h.b16 %v2078
    %v2250 = vunpack.c.l.b16 %v2079
    %v2251 = vunpack.c.h.b16 %v2079
    %v2252 = vunpack.c.l.b16 %v2080
    %v2253 = vunpack.c.h.b16 %v2080
    %v2254 = vunpack.c.l.b16 %v2081
    %v2255 = vunpack.c.h.b16 %v2081
    %v2256 = vunpack.c.l.b16 %v2082
    %v2257 = vunpack.c.h.b16 %v2082
    %v2258 = vunpack.c.l.b16 %v2083
    %v2259 = vunpack.c.h.b16 %v2083
    %v2260 = vunpack.c.l.b16 %v2084
    %v2261 = vunpack.c.h.b16 %v2084
    %v2262 = vunpack.c.l.b16 %v2085
    %v2263 = vunpack.c.h.b16 %v2085
    %v2264 = vunpack.c.l.b16 %v2086
    %v2265 = vunpack.c.h.b16 %v2086
    %v2266 = vunpack.c.l.b16 %v2087
    %v2267 = vunpack.c.h.b16 %v2087
    %v2268 = vunpack.c.l.b16 %v2088
    %v2269 = vunpack.c.h.b16 %v2088
    %v2270 = vunpack.c.l.b16 %v2089
    %v2271 = vunpack.c.h.b16 %v2089
    %v2272 = vunpack.c.l.b16 %v2090
    %v2273 = vunpack.c.h.b16 %v2090
    %v2274 = vunpack.c.l.b16 %v2091
    %v2275 = vunpack.c.h.b16 %v2091
    %v2276 = vunpack.c.l.b16 %v2092
    %v2277 = vunpack.c.h.b16 %v2092
    %v2278 = vunpack.c.l.b16 %v2093
    %v2279 = vunpack.c.h.b16 %v2093
    %v2280 = vunpack.c.l.b16 %v2094
    %v2281 = vunpack.c.h.b16 %v2094
    %v2282 = vunpack.c.l.b16 %v2095
    %v2283 = vunpack.c.h.b16 %v2095
    %v2284 = vunpack.c.l.b16 %v2096
    %v2285 = vunpack.c.h.b16 %v2096
    %v2286 = vunpack.c.l.b16 %v2097
    %v2287 = vunpack.c.h.b16 %v2097
    %v2288 = vunpack.c.l.b16 %v2098
    %v2289 = vunpack.c.h.b16 %v2098
    %v2290 = vunpack.c.l.b16 %v2099
    %v2291 = vunpack.c.h.b16 %v2099
    %v2292 = vunpack.c.l.b16 %v2100
    %v2293 = vunpack.c.h.b16 %v2100
    %v2294 = vunpack.c.l.b16 %v2101
    %v2295 = vunpack.c.h.b16 %v2101
    %v2296 = vunpack.c.l.b16 %v2102
    %v2297 = vunpack.c.h.b16 %v2102
    %v2298 = vunpack.c.l.b16 %v2103
    %v2299 = vunpack.c.h.b16 %v2103
    %v2300 = vunpack.c.l.b16 %v2104
    %v2301 = vunpack.c.h.b16 %v2104
    %v2302 = vunpack.c.l.b16 %v2105
    %v2303 = vunpack.c.h.b16 %v2105
    %v2304 = vunpack.c.l.b16 %v2106
    %v2305 = vunpack.c.h.b16 %v2106
    %v2306 = vunpack.c.l.b16 %v2107
    %v2307 = vunpack.c.h.b16 %v2107
    %v2308 = vunpack.c.l.b16 %v2108
    %v2309 = vunpack.c.h.b16 %v2108
    %v2310 = vunpack.c.l.b16 %v2109
    %v2311 = vunpack.c.h.b16 %v2109
    %v2312 = vunpack.c.l.b16 %v2110
    %v2313 = vunpack.c.h.b16 %v2110
    %v2314 = vunpack.c.l.b16 %v2111
    %v2315 = vunpack.c.h.b16 %v2111
    %v2316 = vpack.c.b16 %v2190, %v2188
    %v2317 = vpack.c.b16 %v2191, %v2189
    %v2318 = vpack.c.b16 %v2194, %v2192
    %v2319 = vpack.c.b16 %v2195, %v2193
    %v2320 = vpack.c.b16 %v2198, %v2196
    %v2321 = vpack.c.b16 %v2199, %v2197
    %v2322 = vpack.c.b16 %v2202, %v2200
    %v2323 = vpack.c.b16 %v2203, %v2201
    %v2324 = vpack.c.b16 %v2206, %v2204
    %v2325 = vpack.c.b16 %v2207, %v2205
    %v2326 = vpack.c.b16 %v2210, %v2208
    %v2327 = vpack.c.b16 %v2211, %v2209
    %v2328 = vpack.c.b16 %v2214, %v2212
    %v2329 = vpack.c.b16 %v2215, %v2213
    %v2330 = vpack.c.b16 %v2218, %v2216
    %v2331 = vpack.c.b16 %v2219, %v2217
    %v2332 = vpack.c.b16 %v2222, %v2220
    %v2333 = vpack.c.b16 %v2223, %v2221
    %v2334 = vpack.c.b16 %v2226, %v2224
    %v2335 = vpack.c.b16 %v2227, %v2225
    %v2336 = vpack.c.b16 %v2230, %v2228
    %v2337 = vpack.c.b16 %v2231, %v2229
    %v2338 = vpack.c.b16 %v2234, %v2232
    %v2339 = vpack.c.b16 %v2235, %v2233
    %v2340 = vpack.c.b16 %v2238, %v2236
    %v2341 = vpack.c.b16 %v2239, %v2237
    %v2342 = vpack.c.b16 %v2242, %v2240
    %v2343 = vpack.c.b16 %v2243, %v2241
    %v2344 = vpack.c.b16 %v2246, %v2244
    %v2345 = vpack.c.b16 %v2247, %v2245
    %v2346 = vpack.c.b16 %v2250, %v2248
    %v2347 = vpack.c.b16 %v2251, %v2249
    %v2348 = vpack.c.b16 %v2254, %v2252
    %v2349 = vpack.c.b16 %v2255, %v2253
    %v2350 = vpack.c.b16 %v2258, %v2256
    %v2351 = vpack.c.b16 %v2259, %v2257
    %v2352 = vpack.c.b16 %v2262, %v2260
    %v2353 = vpack.c.b16 %v2263, %v2261
    %v2354 = vpack.c.b16 %v2266, %v2264
    %v2355 = vpack.c.b16 %v2267, %v2265
    %v2356 = vpack.c.b16 %v2270, %v2268
    %v2357 = vpack.c.b16 %v2271, %v2269
    %v2358 = vpack.c.b16 %v2274, %v2272
    %v2359 = vpack.c.b16 %v2275, %v2273
    %v2360 = vpack.c.b16 %v2278, %v2276
    %v2361 = vpack.c.b16 %v2279, %v2277
    %v2362 = vpack.c.b16 %v2282, %v2280
    %v2363 = vpack.c.b16 %v2283, %v2281
    %v2364 = vpack.c.b16 %v2286, %v2284
    %v2365 = vpack.c.b16 %v2287, %v2285
    %v2366 = vpack.c.b16 %v2290, %v2288
    %v2367 = vpack.c.b16 %v2291, %v2289
    %v2368 = vpack.c.b16 %v2294, %v2292
    %v2369 = vpack.c.b16 %v2295, %v2293
    %v2370 = vpack.c.b16 %v2298, %v2296
    %v2371 = vpack.c.b16 %v2299, %v2297
    %v2372 = vpack.c.b16 %v2302, %v2300
    %v2373 = vpack.c.b16 %v2303, %v2301
    %v2374 = vpack.c.b16 %v2306, %v2304
    %v2375 = vpack.c.b16 %v2307, %v2305
    %v2376 = vpack.c.b16 %v2310, %v2308
    %v2377 = vpack.c.b16 %v2311, %v2309
    %v2378 = vpack.c.b16 %v2314, %v2312
    %v2379 = vpack.c.b16 %v2315, %v2313
    %2444 = vmatprep.subr.bf16.mxu0 %v2317
    %2445 = vmatpush1.bf16.msra.mxu0 %v2316
    %2446 = vmatprep.subr.bf16.mxu0 %v2319
    %2447 = vmatpush1.bf16.msra.mxu0 %v2318
    %2448 = vmatprep.subr.bf16.mxu0 %v2321
    %2449 = vmatpush1.bf16.msra.mxu0 %v2320
    %2450 = vmatprep.subr.bf16.mxu0 %v2323
    %2451 = vmatpush1.bf16.msra.mxu0 %v2322
    %2452 = vmatprep.subr.bf16.mxu0 %v2325
    %2453 = vmatpush1.bf16.msra.mxu0 %v2324
    %2454 = vmatprep.subr.bf16.mxu0 %v2327
    %2455 = vmatpush1.bf16.msra.mxu0 %v2326
    %2456 = vmatprep.subr.bf16.mxu0 %v2329
    %2457 = vmatpush1.bf16.msra.mxu0 %v2328
    %2458 = vmatprep.subr.bf16.mxu0 %v2331
    %2459 = vmatpush1.bf16.msra.mxu0 %v2330
    %2460 = vmatprep.subr.bf16.mxu0 %v2333
    %2461 = vmatpush1.bf16.msra.mxu0 %v2332
    %2462 = vmatprep.subr.bf16.mxu0 %v2335
    %2463 = vmatpush1.bf16.msra.mxu0 %v2334
    %2464 = vmatprep.subr.bf16.mxu0 %v2337
    %2465 = vmatpush1.bf16.msra.mxu0 %v2336
    %2466 = vmatprep.subr.bf16.mxu0 %v2339
    %2467 = vmatpush1.bf16.msra.mxu0 %v2338
    %2468 = vmatprep.subr.bf16.mxu0 %v2341
    %2469 = vmatpush1.bf16.msra.mxu0 %v2340
    %2470 = vmatprep.subr.bf16.mxu0 %v2343
    %2471 = vmatpush1.bf16.msra.mxu0 %v2342
    %2472 = vmatprep.subr.bf16.mxu0 %v2345
    %2473 = vmatpush1.bf16.msra.mxu0 %v2344
    %2474 = vmatprep.subr.bf16.mxu0 %v2347
    %2475 = vmatpush1.bf16.msra.mxu0 %v2346
    %2476 = vmatprep.mubr.bf16.mxu0 %v2045
    %2477 = vmatmul.mubr.bf16.gmra.mrb[0].mxu0 %v2044
    %v2478 = vpop.f32.mrb[0].mxu0
    %v2479 = vadd.f32 %v2117, %v2478
    %v2480 = vpop.f32.mrb[0].mxu0
    %v2481 = vadd.f32 %v2121, %v2480
    %v2482 = vpop.f32.mrb[0].mxu0
    %v2483 = vpop.f32.mrb[0].mxu0
    %2484 = vdwg.mxu0
    %2485 = vmatprep.subr.bf16.mxu0 %v2349
    %2486 = vmatpush1.bf16.msra.mxu0 %v2348
    %2487 = vmatprep.subr.bf16.mxu0 %v2351
    %2488 = vmatpush1.bf16.msra.mxu0 %v2350
    %2489 = vmatprep.subr.bf16.mxu0 %v2353
    %2490 = vmatpush1.bf16.msra.mxu0 %v2352
    %2491 = vmatprep.subr.bf16.mxu0 %v2355
    %2492 = vmatpush1.bf16.msra.mxu0 %v2354
    %2493 = vmatprep.subr.bf16.mxu0 %v2357
    %2494 = vmatpush1.bf16.msra.mxu0 %v2356
    %2495 = vmatprep.subr.bf16.mxu0 %v2359
    %2496 = vmatpush1.bf16.msra.mxu0 %v2358
    %2497 = vmatprep.subr.bf16.mxu0 %v2361
    %2498 = vmatpush1.bf16.msra.mxu0 %v2360
    %2499 = vmatprep.subr.bf16.mxu0 %v2363
    %2500 = vmatpush1.bf16.msra.mxu0 %v2362
    %2501 = vmatprep.subr.bf16.mxu0 %v2365
    %2502 = vmatpush1.bf16.msra.mxu0 %v2364
    %2503 = vmatprep.subr.bf16.mxu0 %v2367
    %2504 = vmatpush1.bf16.msra.mxu0 %v2366
    %2505 = vmatprep.subr.bf16.mxu0 %v2369
    %2506 = vmatpush1.bf16.msra.mxu0 %v2368
    %2507 = vmatprep.subr.bf16.mxu0 %v2371
    %2508 = vmatpush1.bf16.msra.mxu0 %v2370
    %2509 = vmatprep.subr.bf16.mxu0 %v2373
    %2510 = vmatpush1.bf16.msra.mxu0 %v2372
    %2511 = vmatprep.subr.bf16.mxu0 %v2375
    %2512 = vmatpush1.bf16.msra.mxu0 %v2374
    %2513 = vmatprep.subr.bf16.mxu0 %v2377
    %2514 = vmatpush1.bf16.msra.mxu0 %v2376
    %2515 = vmatprep.subr.bf16.mxu0 %v2379
    %2516 = vmatpush1.bf16.msra.mxu0 %v2378
    %2517 = vmatprep.mubr.bf16.mxu0 %v2047
    %2518 = vmatmul.mubr.bf16.gmra.mrb[0].mxu0 %v2046
    %v2519 = vpop.f32.mrb[0].mxu0
    %v2520 = vadd.f32 %v2479, %v2519
    %v2521 = vpop.f32.mrb[0].mxu0
    %v2522 = vadd.f32 %v2481, %v2521
    %v2523 = vpop.f32.mrb[0].mxu0
    %v2524 = vpop.f32.mrb[0].mxu0
    %2525 = vdwg.mxu0
    %v2526 = vmax.f32 %v2520, 0.0
    %v2527 = vmax.f32 %v2522, 0.0
    %v2528 = vpack.c.bf16 %v2526, %v2526
    %v2529 = vpack.c.bf16 %v2527, %v2527
    %v2530 = vld [vmem:[#allocation8] sm:$0xf]
    %v2531 = vld [vmem:[#allocation8 + $0x4] sm:$0xf]
    %v2532 = vld [vmem:[#allocation8 + $0x8] sm:$0xf]
    %v2533 = vld [vmem:[#allocation8 + $0xc] sm:$0xf]
    %v2534 = vld [vmem:[#allocation8 + $0x10] sm:$0xf]
    %v2535 = vld [vmem:[#allocation8 + $0x14] sm:$0xf]
    %v2536 = vld [vmem:[#allocation8 + $0x18] sm:$0xf]
    %v2537 = vld [vmem:[#allocation8 + $0x1c] sm:$0xf]
    %v2538 = vld [vmem:[#allocation8 + $0x20] sm:$0xf]
    %v2539 = vld [vmem:[#allocation8 + $0x24] sm:$0xf]
    %v2540 = vld [vmem:[#allocation8 + $0x28] sm:$0xf]
    %v2541 = vld [vmem:[#allocation8 + $0x2c] sm:$0xf]
    %v2542 = vld [vmem:[#allocation8 + $0x30] sm:$0xf]
    %v2543 = vld [vmem:[#allocation8 + $0x34] sm:$0xf]
    %v2544 = vld [vmem:[#allocation8 + $0x38] sm:$0xf]
    %v2545 = vld [vmem:[#allocation8 + $0x3c] sm:$0xf]
    %v2546 = vld [vmem:[#allocation8 + $0x40] sm:$0xf]
    %v2547 = vld [vmem:[#allocation8 + $0x44] sm:$0xf]
    %v2548 = vld [vmem:[#allocation8 + $0x48] sm:$0xf]
    %v2549 = vld [vmem:[#allocation8 + $0x4c] sm:$0xf]
    %v2550 = vld [vmem:[#allocation8 + $0x50] sm:$0xf]
    %v2551 = vld [vmem:[#allocation8 + $0x54] sm:$0xf]
    %v2552 = vld [vmem:[#allocation8 + $0x58] sm:$0xf]
    %v2553 = vld [vmem:[#allocation8 + $0x5c] sm:$0xf]
    %v2554 = vld [vmem:[#allocation8 + $0x60] sm:$0xf]
    %v2555 = vld [vmem:[#allocation8 + $0x64] sm:$0xf]
    %v2556 = vld [vmem:[#allocation8 + $0x68] sm:$0xf]
    %v2557 = vld [vmem:[#allocation8 + $0x6c] sm:$0xf]
    %v2558 = vld [vmem:[#allocation8 + $0x70] sm:$0xf]
    %v2559 = vld [vmem:[#allocation8 + $0x74] sm:$0xf]
    %v2560 = vld [vmem:[#allocation8 + $0x78] sm:$0xf]
    %v2561 = vld [vmem:[#allocation8 + $0x7c] sm:$0xf]
    %v2562 = vld [vmem:[%s6] sm:$0x1]
    %v2564 = vlaneseq
    %v2565 = vshrl.u32 %v2564, 7
    %v2566 = vsub.s32 0, %v2565
    %v2567 = vrot.slane %v2562, %v2566
    %v2601 = vunpack.c.l.b16 %v2530
    %v2602 = vunpack.c.l.b16 %v2531
    %v2603 = vunpack.c.l.b16 %v2532
    %v2604 = vunpack.c.l.b16 %v2533
    %v2605 = vunpack.c.l.b16 %v2534
    %v2606 = vunpack.c.l.b16 %v2535
    %v2607 = vunpack.c.l.b16 %v2536
    %v2608 = vunpack.c.l.b16 %v2537
    %v2609 = vunpack.c.l.b16 %v2538
    %v2610 = vunpack.c.l.b16 %v2539
    %v2611 = vunpack.c.l.b16 %v2540
    %v2612 = vunpack.c.l.b16 %v2541
    %v2613 = vunpack.c.l.b16 %v2542
    %v2614 = vunpack.c.l.b16 %v2543
    %v2615 = vunpack.c.l.b16 %v2544
    %v2616 = vunpack.c.l.b16 %v2545
    %v2617 = vunpack.c.l.b16 %v2546
    %v2618 = vunpack.c.l.b16 %v2547
    %v2619 = vunpack.c.l.b16 %v2548
    %v2620 = vunpack.c.l.b16 %v2549
    %v2621 = vunpack.c.l.b16 %v2550
    %v2622 = vunpack.c.l.b16 %v2551
    %v2623 = vunpack.c.l.b16 %v2552
    %v2624 = vunpack.c.l.b16 %v2553
    %v2625 = vunpack.c.l.b16 %v2554
    %v2626 = vunpack.c.l.b16 %v2555
    %v2627 = vunpack.c.l.b16 %v2556
    %v2628 = vunpack.c.l.b16 %v2557
    %v2629 = vunpack.c.l.b16 %v2558
    %v2630 = vunpack.c.l.b16 %v2559
    %v2631 = vunpack.c.l.b16 %v2560
    %v2632 = vunpack.c.l.b16 %v2561
    %v2633 = vpack.c.b16 %v2602, %v2601
    %v2634 = vpack.c.b16 %v2604, %v2603
    %v2635 = vpack.c.b16 %v2606, %v2605
    %v2636 = vpack.c.b16 %v2608, %v2607
    %v2637 = vpack.c.b16 %v2610, %v2609
    %v2638 = vpack.c.b16 %v2612, %v2611
    %v2639 = vpack.c.b16 %v2614, %v2613
    %v2640 = vpack.c.b16 %v2616, %v2615
    %v2641 = vpack.c.b16 %v2618, %v2617
    %v2642 = vpack.c.b16 %v2620, %v2619
    %v2643 = vpack.c.b16 %v2622, %v2621
    %v2644 = vpack.c.b16 %v2624, %v2623
    %v2645 = vpack.c.b16 %v2626, %v2625
    %v2646 = vpack.c.b16 %v2628, %v2627
    %v2647 = vpack.c.b16 %v2630, %v2629
    %v2648 = vpack.c.b16 %v2632, %v2631
    %2665 = vmatprep.subr.bf16.mxu0 0
    %2666 = vmatpush1.bf16.msra.mxu0 %v2633
    %2667 = vmatprep.subr.bf16.mxu0 0
    %2668 = vmatpush1.bf16.msra.mxu0 %v2634
    %2669 = vmatprep.subr.bf16.mxu0 0
    %2670 = vmatpush1.bf16.msra.mxu0 %v2635
    %2671 = vmatprep.subr.bf16.mxu0 0
    %2672 = vmatpush1.bf16.msra.mxu0 %v2636
    %2673 = vmatprep.subr.bf16.mxu0 0
    %2674 = vmatpush1.bf16.msra.mxu0 %v2637
    %2675 = vmatprep.subr.bf16.mxu0 0
    %2676 = vmatpush1.bf16.msra.mxu0 %v2638
    %2677 = vmatprep.subr.bf16.mxu0 0
    %2678 = vmatpush1.bf16.msra.mxu0 %v2639
    %2679 = vmatprep.subr.bf16.mxu0 0
    %2680 = vmatpush1.bf16.msra.mxu0 %v2640
    %2681 = vmatprep.subr.bf16.mxu0 0
    %2682 = vmatpush1.bf16.msra.mxu0 %v2641
    %2683 = vmatprep.subr.bf16.mxu0 0
    %2684 = vmatpush1.bf16.msra.mxu0 %v2642
    %2685 = vmatprep.subr.bf16.mxu0 0
    %2686 = vmatpush1.bf16.msra.mxu0 %v2643
    %2687 = vmatprep.subr.bf16.mxu0 0
    %2688 = vmatpush1.bf16.msra.mxu0 %v2644
    %2689 = vmatprep.subr.bf16.mxu0 0
    %2690 = vmatpush1.bf16.msra.mxu0 %v2645
    %2691 = vmatprep.subr.bf16.mxu0 0
    %2692 = vmatpush1.bf16.msra.mxu0 %v2646
    %2693 = vmatprep.subr.bf16.mxu0 0
    %2694 = vmatpush1.bf16.msra.mxu0 %v2647
    %2695 = vmatprep.subr.bf16.mxu0 0
    %2696 = vmatpush1.bf16.msra.mxu0 %v2648
    %2697 = vmatprep.mubr.bf16.mxu0 %v2529
    %2698 = vmatmul.mubr.bf16.gmra.mrb[0].mxu0 %v2528
    %v2699 = vpop.f32.mrb[0].mxu0
    %v2700 = vadd.f32 %v2567, %v2699
    %v2701 = vpop.f32.mrb[0].mxu0
    %v2702 = vpop.f32.mrb[0].mxu0
    %v2703 = vpop.f32.mrb[0].mxu0
    %2704 = vdwg.mxu0
    %v2705 = vmax.f32 %v2700, 0.0
    %v2706 = vpack.c.bf16 %v2705, %v2705
    %v2707 = vld [vmem:[#allocation10] sm:$0xf]
    %v2708 = vld [vmem:[#allocation10 + $0x4] sm:$0xf]
    %v2709 = vld [vmem:[#allocation10 + $0x8] sm:$0xf]
    %v2710 = vld [vmem:[#allocation10 + $0xc] sm:$0xf]
    %v2711 = vld [vmem:[#allocation10 + $0x10] sm:$0xf]
    %v2712 = vld [vmem:[#allocation10 + $0x14] sm:$0xf]
    %v2713 = vld [vmem:[#allocation10 + $0x18] sm:$0xf]
    %v2714 = vld [vmem:[#allocation10 + $0x1c] sm:$0xf]
    %v2715 = vld [vmem:[#allocation10 + $0x20] sm:$0xf]
    %v2716 = vld [vmem:[#allocation10 + $0x24] sm:$0xf]
    %v2717 = vld [vmem:[#allocation10 + $0x28] sm:$0xf]
    %v2718 = vld [vmem:[#allocation10 + $0x2c] sm:$0xf]
    %v2719 = vld [vmem:[#allocation10 + $0x30] sm:$0xf]
    %v2720 = vld [vmem:[#allocation10 + $0x34] sm:$0xf]
    %v2721 = vld [vmem:[#allocation10 + $0x38] sm:$0xf]
    %v2722 = vld [vmem:[#allocation10 + $0x3c] sm:$0xf]
    %v2723 = vld [vmem:[%s8] sm:$0x1]
    %v2725 = vlaneseq
    %v2726 = vshrl.u32 %v2725, 7
    %v2727 = vsub.s32 0, %v2726
    %v2728 = vrot.slane %v2723, %v2727
    %v2746 = vunpack.c.l.b16 %v2707
    %v2747 = vunpack.c.l.b16 %v2708
    %v2748 = vunpack.c.l.b16 %v2709
    %v2749 = vunpack.c.l.b16 %v2710
    %v2750 = vunpack.c.l.b16 %v2711
    %v2751 = vunpack.c.l.b16 %v2712
    %v2752 = vunpack.c.l.b16 %v2713
    %v2753 = vunpack.c.l.b16 %v2714
    %v2754 = vunpack.c.l.b16 %v2715
    %v2755 = vunpack.c.l.b16 %v2716
    %v2756 = vunpack.c.l.b16 %v2717
    %v2757 = vunpack.c.l.b16 %v2718
    %v2758 = vunpack.c.l.b16 %v2719
    %v2759 = vunpack.c.l.b16 %v2720
    %v2760 = vunpack.c.l.b16 %v2721
    %v2761 = vunpack.c.l.b16 %v2722
    %v2762 = vpack.c.b16 %v2747, %v2746
    %v2763 = vpack.c.b16 %v2749, %v2748
    %v2764 = vpack.c.b16 %v2751, %v2750
    %v2765 = vpack.c.b16 %v2753, %v2752
    %v2766 = vpack.c.b16 %v2755, %v2754
    %v2767 = vpack.c.b16 %v2757, %v2756
    %v2768 = vpack.c.b16 %v2759, %v2758
    %v2769 = vpack.c.b16 %v2761, %v2760
    %2778 = vmatprep.subr.bf16.mxu0 0
    %2779 = vmatpush1.bf16.msra.mxu0 %v2762
    %2780 = vmatprep.subr.bf16.mxu0 0
    %2781 = vmatpush1.bf16.msra.mxu0 %v2763
    %2782 = vmatprep.subr.bf16.mxu0 0
    %2783 = vmatpush1.bf16.msra.mxu0 %v2764
    %2784 = vmatprep.subr.bf16.mxu0 0
    %2785 = vmatpush1.bf16.msra.mxu0 %v2765
    %2786 = vmatprep.subr.bf16.mxu0 0
    %2787 = vmatpush1.bf16.msra.mxu0 %v2766
    %2788 = vmatprep.subr.bf16.mxu0 0
    %2789 = vmatpush1.bf16.msra.mxu0 %v2767
    %2790 = vmatprep.subr.bf16.mxu0 0
    %2791 = vmatpush1.bf16.msra.mxu0 %v2768
    %2792 = vmatprep.subr.bf16.mxu0 0
    %2793 = vmatpush1.bf16.msra.mxu0 %v2769
    %2794 = vmatprep.subr.bf16.mxu0 0
    %2795 = vmatpush1.bf16.msra.mxu0 0
    %2796 = vmatprep.subr.bf16.mxu0 0
    %2797 = vmatpush1.bf16.msra.mxu0 0
    %2798 = vmatprep.subr.bf16.mxu0 0
    %2799 = vmatpush1.bf16.msra.mxu0 0
    %2800 = vmatprep.subr.bf16.mxu0 0
    %2801 = vmatpush1.bf16.msra.mxu0 0
    %2802 = vmatprep.subr.bf16.mxu0 0
    %2803 = vmatpush1.bf16.msra.mxu0 0
    %2804 = vmatprep.subr.bf16.mxu0 0
    %2805 = vmatpush1.bf16.msra.mxu0 0
    %2806 = vmatprep.subr.bf16.mxu0 0
    %2807 = vmatpush1.bf16.msra.mxu0 0
    %2808 = vmatprep.subr.bf16.mxu0 0
    %2809 = vmatpush1.bf16.msra.mxu0 0
    %2810 = vmatprep.mubr.bf16.mxu0 0
    %2811 = vmatmul.mubr.bf16.gmra.mrb[0].mxu0 %v2706
    %v2812 = vpop.f32.mrb[0].mxu0
    %v2813 = vadd.f32 %v2728, %v2812
    %v2814 = vpop.f32.mrb[0].mxu0
    %v2815 = vpop.f32.mrb[0].mxu0
    %v2816 = vpop.f32.mrb[0].mxu0
    %2817 = vdwg.mxu0
    %vm2818 = vcmask 1041408
    %v2819 = vsel %vm2818, %v2813, -inf
    %2820 = vmax.xlane.f32.xlu0 %v2819
    %v2821 = vpop.xlane.xlu0 %2820
    %v2822 = vsub.f32 %v2813, %v2821
    %v2823 = vmul.f32 %v2822, 1.442695
    %v2824 = vpow.pop %v2823
    %v2825 = vsel %vm2818, %v2824, 0.0
    %2826 = vadd.xlane.f32.xlu0 %v2825
    %v2827 = vpop.xlane.xlu0 %2826
    %v2828 = vrcp.pop %v2827
    %v2829 = vmul.f32 %v2824, %v2828
    %2830 = vst [vmem:[#allocation11] sm:$0x3] %v2829
    // Predicated region
    $region58: #{tpu_custom_call.1} parent=1 // pred_check
      _
    $region59: #{tpu_custom_call.1} parent=1 // pred_check_branch
      %2832 = sbr.rel (0) target = $region61
    $region60: #{tpu_custom_call.1} parent=1 // pred_region
      %s2834 = ssub.s32 32, 32
      %2835 = vsyncadd [#allocation4], %s2834
      %s2837 = sshll.u32 [#allocation11], 4
      %s2838 = int_to_ptr.vmem [resolvable:$true] %s2837
      %2840 = dma.vmem_to_hbm [thread:$0]  %s2838, 32, %s9, [#allocation4]
    $region61: #{tpu_custom_call.1} parent=1 // pred_fallthru
      _
    // Predicated region
    $region62: #{tpu_custom_call.1} parent=1 // pred_check
      _
    $region63: #{tpu_custom_call.1} parent=1 // pred_check_branch
      %2842 = sbr.rel (0) target = $region65
    $region64: #{tpu_custom_call.1} parent=1 // pred_region
      %2843 = dma.done [#allocation4], 32
    $region65: #{tpu_custom_call.1} parent=1 // pred_fallthru
      _
    %2844 = vsyncpa [#allocation3], 1
    %2845 = vsyncpa [#allocation6], 1
    %2846 = vsyncpa [#allocation9], 1
    %2847 = vsyncpa [#allocation4], 1

</llo_original>
